<compile_context>
chip_gen: v6e
topology: v6e:2x2x1
jax: 0.10.0
libtpu: 0.0.40
codegen_flags: <defaults>
</compile_context>

<pallas_src>
import functools

import jax
import jax.numpy as jnp
from jax import lax
from jax.experimental import pallas as pl
from jax.experimental.pallas import tpu as pltpu


def _mlp_kernel(x_ref, emb_ref, wh_ref, bh_ref, wf_ref, bf_ref, o_ref,
                *, num_feats, vocab, n_hidden):
    """One batch tile of the fused forward pass.

    Embedding lookup is a single K = F*V one-hot matmul on the MXU: the F
    per-feature one-hot bands occupy disjoint lane ranges of one [TB, F*V]
    slab, so the per-feature sum collapses into the MXU accumulator of a
    single dot (instead of F tiny matmuls + VPU adds).
    """
    tb = x_ref.shape[0]
    fv = num_feats * vocab
    mxu_dtype = emb_ref.dtype                      # bf16 (default) or f32

    x = x_ref[...]                                 # [TB, F] int32

    # Fused one-hot slab: lanes [i*V, (i+1)*V) hold feature i's one-hot row.
    lane = lax.broadcasted_iota(jnp.int32, (tb, fv), 1)
    oh = jnp.zeros((tb, fv), jnp.float32)
    for i in range(num_feats):                     # static, small; bands disjoint
        oh = oh + (lane == (x[:, i:i + 1] + i * vocab)).astype(jnp.float32)

    # USAANR_Embedding_MLP: sum of per-feature lookups == one [TB,FV]@[FV,H] dot.
    h = jnp.dot(oh.astype(mxu_dtype), emb_ref[...],
                preferred_element_type=jnp.float32)          # [TB, H] f32

    # Hidden layers: Linear + ReLU (dropout p=0 -> identity).  Matmul inputs in
    # mxu_dtype; bias add + ReLU kept in f32 (v5e has no bf16 VPU/EUP).
    for l in range(n_hidden):                      # static Python loop
        h = jnp.dot(h.astype(mxu_dtype), wh_ref[l],
                    preferred_element_type=jnp.float32)
        h = jnp.maximum(h + bh_ref[l:l + 1, :], 0.0)

    # Final linear (output block is lane-padded to 128 -> unmasked vst).
    o_ref[...] = (jnp.dot(h.astype(mxu_dtype), wf_ref[...],
                          preferred_element_type=jnp.float32)
                  + bf_ref[...])


def mlp_forward(x, emb_tables, w_hidden, b_hidden, w_final, b_final,
                *, tb=256, use_bf16=True, vmem_limit_bytes=32 * 1024 * 1024):
    """x: [B, F] int ids; emb_tables: [F, V, H]; w_hidden: [n_hidden, H, H]
    (stored as in_dim x out_dim); returns [B, out_dim] float32."""
    B, F = x.shape
    Fe, V, H = emb_tables.shape
    assert Fe == F
    n_hidden = w_hidden.shape[0]
    out_dim = w_final.shape[1]
    # TODO(synk): n_layers == 1 branch (n_hidden == 0, single Linear) not handled.
    # TODO(synk): for large vocabularies (V >> 128) the one-hot matmul should be
    # replaced by a scalar-prefetch DMA gather (PrefetchScalarGridSpec + pl.ANY).

    mxu_dtype = jnp.bfloat16 if use_bf16 else jnp.float32

    # Batch tile: MXU-aligned (256 feeds the 2x256 MXU of v6e/v7x, also /128
    # for v5e's 4x128 MXU); pad B up to a tile multiple.
    b_pad = tb * pl.cdiv(B, tb)
    # Lane-dense output: pad out_dim up to a multiple of 128.
    out_pad = 128 * pl.cdiv(out_dim, 128)

    x_p = jnp.zeros((b_pad, F), jnp.int32).at[:B].set(x.astype(jnp.int32))
    emb2d = emb_tables.reshape(F * V, H).astype(mxu_dtype)     # [F*V, H]
    wh = w_hidden.astype(mxu_dtype)
    bh = b_hidden.astype(jnp.float32)
    wf = jnp.zeros((H, out_pad), mxu_dtype).at[:, :out_dim].set(
        w_final.astype(mxu_dtype))
    bf = jnp.zeros((1, out_pad), jnp.float32).at[:, :out_dim].set(
        b_final.reshape(1, -1).astype(jnp.float32))

    kernel = functools.partial(
        _mlp_kernel, num_feats=F, vocab=V, n_hidden=n_hidden)

    out = pl.pallas_call(
        kernel,
        out_shape=jax.ShapeDtypeStruct((b_pad, out_pad), jnp.float32),
        grid_spec=pltpu.PrefetchScalarGridSpec(
            num_scalar_prefetch=0,
            grid=(b_pad // tb,),
            in_specs=[
                pl.BlockSpec((tb, F), lambda i: (i, 0)),             # batch-tiled
                pl.BlockSpec((F * V, H), lambda i: (0, 0)),          # resident
                pl.BlockSpec((n_hidden, H, H), lambda i: (0, 0, 0)), # resident
                pl.BlockSpec((n_hidden, H), lambda i: (0, 0)),       # resident
                pl.BlockSpec((H, out_pad), lambda i: (0, 0)),        # resident
                pl.BlockSpec((1, out_pad), lambda i: (0, 0)),        # resident
            ],
            out_specs=pl.BlockSpec((tb, out_pad), lambda i: (i, 0)),
        ),
        compiler_params=pltpu.CompilerParams(
            dimension_semantics=("parallel",),      # shard tiles across v7x TCs
            vmem_limit_bytes=vmem_limit_bytes),
    )(x_p, emb2d, wh, bh, wf, bf)
    return out[:B, :out_dim]


if __name__ == "__main__":
    # Small, deterministic synthetic setup consistent with the module:
    #   feat_list of 4 categorical features, h_dim=32, out_dim=8, n_layers=3.
    B, F, V_MAX, H, OUT, N_LAYERS = 8, 4, 16, 32, 8, 3
    vocab_sizes = [5, 7, 3, 9]        # == len(DF[col].unique()) + 1 per feature
    n_hidden = N_LAYERS - 1           # n_layers-1 hidden (Linear+ReLU) + 1 final

    key = jax.random.PRNGKey(0)
    k_emb, k_wh, k_wf, k_x = jax.random.split(key, 4)

    # Embedding tables: N(0,1) like nn.Embedding default; pad vocabs to V_MAX
    # with exact zeros (required for the one-hot-matmul trick to be exact).
    emb = jax.random.normal(k_emb, (F, V_MAX, H), jnp.float32)
    vocab_arr = jnp.array(vocab_sizes)
    emb = emb * (jnp.arange(V_MAX)[None, :, None] < vocab_arr[:, None, None])

    # Xavier-uniform with gain = calculate_gain('relu') = sqrt(2), as in the module.
    gain = float(jnp.sqrt(2.0))

    def xavier(k, shape):
        fan_in, fan_out = shape
        limit = gain * (6.0 / (fan_in + fan_out)) ** 0.5
        return jax.random.uniform(k, shape, jnp.float32, -limit, limit)

    wh = jnp.stack([xavier(k, (H, H)) for k in jax.random.split(k_wh, n_hidden)])
    bh = jnp.full((n_hidden, H), 0.01, jnp.float32)   # m.bias.data.fill_(0.01)
    wf = xavier(k_wf, (H, OUT))
    bf = jnp.zeros((1, OUT), jnp.float32)             # final bias (deterministic)

    # Integer feature matrix X: one column per feature, valid ids per vocab.
    x_cols = [jax.random.randint(k, (B,), 0, v)
              for k, v in zip(jax.random.split(k_x, F), vocab_sizes)]
    x = jnp.stack(x_cols, axis=1).astype(jnp.int32)

    # --- exact f32 path: same numerics as the PyTorch module ---
    out_f32 = jax.block_until_ready(
        mlp_forward(x, emb, wh, bh, wf, bf, use_bf16=False))

    href = jnp.zeros((B, H), jnp.float32)
    for i in range(F):
        href = href + emb[i][x[:, i]]
    for l in range(n_hidden):
        href = jnp.maximum(href @ wh[l] + bh[l], 0.0)
    ref_f32 = href @ wf + bf
    assert out_f32.shape == (B, OUT)
    assert jnp.allclose(out_f32, ref_f32, atol=1e-4, rtol=1e-4)

    # --- default bf16-MXU fast path (v6e/v7x); compare against a reference
    #     that applies the same bf16 weight quantization / f32 accumulation ---
    out_bf16 = jax.block_until_ready(mlp_forward(x, emb, wh, bh, wf, bf))

    def q(a):
        return a.astype(jnp.bfloat16).astype(jnp.float32)

    hq = jnp.zeros((B, H), jnp.float32)
    for i in range(F):
        hq = hq + q(emb[i])[x[:, i]]
    for l in range(n_hidden):
        hq = jnp.maximum(
            jnp.dot(hq.astype(jnp.bfloat16), wh[l].astype(jnp.bfloat16),
                    preferred_element_type=jnp.float32) + bh[l], 0.0)
    ref_bf16 = jnp.dot(hq.astype(jnp.bfloat16), wf.astype(jnp.bfloat16),
                       preferred_element_type=jnp.float32) + bf
    assert out_bf16.shape == (B, OUT)
    assert jnp.allclose(out_bf16, ref_bf16, atol=2e-2, rtol=2e-2)

    print("KERNEL_OK")
</pallas_src>

<mosaic_0001>
module attributes {stable_mosaic.version = 11 : i64} {
  func.func @_mlp_kernel(%arg0: i32, %arg1: memref<256x4xi32, #tpu.memory_space<vmem>>, %arg2: memref<64x32xf32, #tpu.memory_space<vmem>>, %arg3: memref<2x32x32xf32, #tpu.memory_space<vmem>>, %arg4: memref<2x32xf32, #tpu.memory_space<vmem>>, %arg5: memref<32x128xf32, #tpu.memory_space<vmem>>, %arg6: memref<1x128xf32, #tpu.memory_space<vmem>>, %arg7: memref<256x128xf32, #tpu.memory_space<vmem>>) attributes {dimension_semantics = [#tpu.dimension_semantics<parallel>], iteration_bounds = array<i64: 1>, scalar_prefetch = 0 : i64, scratch_operands = 0 : i64, tpu.core_type = #tpu.core_type<tc>, window_params = [{transform_indices = @transform_0, window_bounds = array<i64: 256, 4>}, {pipeline_mode = #tpu.pipeline_mode<synchronous>, transform_indices = @transform_1, window_bounds = array<i64: 64, 32>}, {pipeline_mode = #tpu.pipeline_mode<synchronous>, transform_indices = @transform_2, window_bounds = array<i64: 2, 32, 32>}, {pipeline_mode = #tpu.pipeline_mode<synchronous>, transform_indices = @transform_3, window_bounds = array<i64: 2, 32>}, {pipeline_mode = #tpu.pipeline_mode<synchronous>, transform_indices = @transform_4, window_bounds = array<i64: 32, 128>}, {pipeline_mode = #tpu.pipeline_mode<synchronous>, transform_indices = @transform_5, window_bounds = array<i64: 1, 128>}, {transform_indices = @transform_6, window_bounds = array<i64: 256, 128>}]} {
    %c0 = arith.constant 0 : index
    %c0_0 = arith.constant 0 : index
    %0 = vector.load %arg1[%c0, %c0_0] : memref<256x4xi32, #tpu.memory_space<vmem>>, vector<256x4xi32>
    %1 = tpu.iota {dimensions = array<i32: 1>} : vector<256x64xi32>
    %cst = arith.constant 0.000000e+00 : f32
    %2 = vector.broadcast %cst : f32 to vector<256x64xf32>
    %3 = vector.extract_strided_slice %0 {offsets = [0, 0], sizes = [256, 1], strides = [1, 1]} : vector<256x4xi32> to vector<256x1xi32>
    %c0_i32 = arith.constant 0 : i32
    %4 = vector.broadcast %c0_i32 : i32 to vector<256x1xi32>
    %5 = arith.addi %3, %4 : vector<256x1xi32>
    %6 = vector.broadcast %5 : vector<256x1xi32> to vector<256x64xi32>
    %7 = arith.cmpi eq, %1, %6 : vector<256x64xi32>
    %8 = arith.extui %7 : vector<256x64xi1> to vector<256x64xi32>
    %9 = arith.sitofp %8 : vector<256x64xi32> to vector<256x64xf32>
    %10 = arith.addf %2, %9 : vector<256x64xf32>
    %11 = vector.extract_strided_slice %0 {offsets = [0, 1], sizes = [256, 1], strides = [1, 1]} : vector<256x4xi32> to vector<256x1xi32>
    %c16_i32 = arith.constant 16 : i32
    %12 = vector.broadcast %c16_i32 : i32 to vector<256x1xi32>
    %13 = arith.addi %11, %12 : vector<256x1xi32>
    %14 = vector.broadcast %13 : vector<256x1xi32> to vector<256x64xi32>
    %15 = arith.cmpi eq, %1, %14 : vector<256x64xi32>
    %16 = arith.extui %15 : vector<256x64xi1> to vector<256x64xi32>
    %17 = arith.sitofp %16 : vector<256x64xi32> to vector<256x64xf32>
    %18 = arith.addf %10, %17 : vector<256x64xf32>
    %19 = vector.extract_strided_slice %0 {offsets = [0, 2], sizes = [256, 1], strides = [1, 1]} : vector<256x4xi32> to vector<256x1xi32>
    %c32_i32 = arith.constant 32 : i32
    %20 = vector.broadcast %c32_i32 : i32 to vector<256x1xi32>
    %21 = arith.addi %19, %20 : vector<256x1xi32>
    %22 = vector.broadcast %21 : vector<256x1xi32> to vector<256x64xi32>
    %23 = arith.cmpi eq, %1, %22 : vector<256x64xi32>
    %24 = arith.extui %23 : vector<256x64xi1> to vector<256x64xi32>
    %25 = arith.sitofp %24 : vector<256x64xi32> to vector<256x64xf32>
    %26 = arith.addf %18, %25 : vector<256x64xf32>
    %27 = vector.extract_strided_slice %0 {offsets = [0, 3], sizes = [256, 1], strides = [1, 1]} : vector<256x4xi32> to vector<256x1xi32>
    %c48_i32 = arith.constant 48 : i32
    %28 = vector.broadcast %c48_i32 : i32 to vector<256x1xi32>
    %29 = arith.addi %27, %28 : vector<256x1xi32>
    %30 = vector.broadcast %29 : vector<256x1xi32> to vector<256x64xi32>
    %31 = arith.cmpi eq, %1, %30 : vector<256x64xi32>
    %32 = arith.extui %31 : vector<256x64xi1> to vector<256x64xi32>
    %33 = arith.sitofp %32 : vector<256x64xi32> to vector<256x64xf32>
    %34 = arith.addf %26, %33 : vector<256x64xf32>
    %c0_1 = arith.constant 0 : index
    %c0_2 = arith.constant 0 : index
    %35 = vector.load %arg2[%c0_1, %c0_2] : memref<64x32xf32, #tpu.memory_space<vmem>>, vector<64x32xf32>
    %cst_3 = arith.constant dense<0.000000e+00> : vector<256x32xf32>
    %36 = tpu.matmul %34, %35, %cst_3 {dimension_numbers = #tpu.dot_dimension_numbers<[1], [0], [0], [1], [0, 0, 1, 1], [], []>} : vector<256x64xf32>, vector<64x32xf32>, vector<256x32xf32> -> vector<256x32xf32>
    %c0_4 = arith.constant 0 : index
    %c0_5 = arith.constant 0 : index
    %c0_6 = arith.constant 0 : index
    %37 = vector.load %arg3[%c0_4, %c0_5, %c0_6] : memref<2x32x32xf32, #tpu.memory_space<vmem>>, vector<1x32x32xf32>
    %38 = vector.shape_cast %37 : vector<1x32x32xf32> to vector<32x32xf32>
    %cst_7 = arith.constant dense<0.000000e+00> : vector<256x32xf32>
    %39 = tpu.matmul %36, %38, %cst_7 {dimension_numbers = #tpu.dot_dimension_numbers<[1], [0], [0], [1], [0, 0, 1, 1], [], []>} : vector<256x32xf32>, vector<32x32xf32>, vector<256x32xf32> -> vector<256x32xf32>
    %c0_8 = arith.constant 0 : index
    %c0_9 = arith.constant 0 : index
    %40 = vector.load %arg4[%c0_8, %c0_9] : memref<2x32xf32, #tpu.memory_space<vmem>>, vector<1x32xf32>
    %41 = vector.broadcast %40 : vector<1x32xf32> to vector<256x32xf32>
    %42 = arith.addf %39, %41 : vector<256x32xf32>
    %cst_10 = arith.constant 0.000000e+00 : f32
    %43 = vector.broadcast %cst_10 : f32 to vector<256x32xf32>
    %44 = arith.maximumf %42, %43 : vector<256x32xf32>
    %c1 = arith.constant 1 : index
    %c0_11 = arith.constant 0 : index
    %c0_12 = arith.constant 0 : index
    %45 = vector.load %arg3[%c1, %c0_11, %c0_12] : memref<2x32x32xf32, #tpu.memory_space<vmem>>, vector<1x32x32xf32>
    %46 = vector.shape_cast %45 : vector<1x32x32xf32> to vector<32x32xf32>
    %cst_13 = arith.constant dense<0.000000e+00> : vector<256x32xf32>
    %47 = tpu.matmul %44, %46, %cst_13 {dimension_numbers = #tpu.dot_dimension_numbers<[1], [0], [0], [1], [0, 0, 1, 1], [], []>} : vector<256x32xf32>, vector<32x32xf32>, vector<256x32xf32> -> vector<256x32xf32>
    %c1_14 = arith.constant 1 : index
    %c0_15 = arith.constant 0 : index
    %48 = vector.load %arg4[%c1_14, %c0_15] : memref<2x32xf32, #tpu.memory_space<vmem>>, vector<1x32xf32>
    %49 = vector.broadcast %48 : vector<1x32xf32> to vector<256x32xf32>
    %50 = arith.addf %47, %49 : vector<256x32xf32>
    %cst_16 = arith.constant 0.000000e+00 : f32
    %51 = vector.broadcast %cst_16 : f32 to vector<256x32xf32>
    %52 = arith.maximumf %50, %51 : vector<256x32xf32>
    %c0_17 = arith.constant 0 : index
    %c0_18 = arith.constant 0 : index
    %53 = vector.load %arg5[%c0_17, %c0_18] : memref<32x128xf32, #tpu.memory_space<vmem>>, vector<32x128xf32>
    %cst_19 = arith.constant dense<0.000000e+00> : vector<256x128xf32>
    %54 = tpu.matmul %52, %53, %cst_19 {dimension_numbers = #tpu.dot_dimension_numbers<[1], [0], [0], [1], [0, 0, 1, 1], [], []>} : vector<256x32xf32>, vector<32x128xf32>, vector<256x128xf32> -> vector<256x128xf32>
    %c0_20 = arith.constant 0 : index
    %c0_21 = arith.constant 0 : index
    %55 = vector.load %arg6[%c0_20, %c0_21] : memref<1x128xf32, #tpu.memory_space<vmem>>, vector<1x128xf32>
    %56 = vector.broadcast %55 : vector<1x128xf32> to vector<256x128xf32>
    %57 = arith.addf %54, %56 : vector<256x128xf32>
    %c0_22 = arith.constant 0 : index
    %c0_23 = arith.constant 0 : index
    %58 = vector.load %arg7[%c0_22, %c0_23] : memref<256x128xf32, #tpu.memory_space<vmem>>, vector<256x128xf32>
    tpu.vector_store %arg7[%c0_22, %c0_23], %57 {strides = array<i32>} : memref<256x128xf32, #tpu.memory_space<vmem>>, vector<256x128xf32>,
    return
  }
  func.func @transform_0(%arg0: i32) -> (i32, i32) {
    %c0_i32 = arith.constant 0 : i32
    %c0_i32_0 = arith.constant 0 : i32
    return %arg0, %c0_i32 : i32, i32
  }
  func.func @transform_1(%arg0: i32) -> (i32, i32) {
    %c0_i32 = arith.constant 0 : i32
    %c0_i32_0 = arith.constant 0 : i32
    %c0_i32_1 = arith.constant 0 : i32
    return %c0_i32, %c0_i32_0 : i32, i32
  }
  func.func @transform_2(%arg0: i32) -> (i32, i32, i32) {
    %c0_i32 = arith.constant 0 : i32
    %c0_i32_0 = arith.constant 0 : i32
    %c0_i32_1 = arith.constant 0 : i32
    %c0_i32_2 = arith.constant 0 : i32
    return %c0_i32, %c0_i32_0, %c0_i32_1 : i32, i32, i32
  }
  func.func @transform_3(%arg0: i32) -> (i32, i32) {
    %c0_i32 = arith.constant 0 : i32
    %c0_i32_0 = arith.constant 0 : i32
    %c0_i32_1 = arith.constant 0 : i32
    return %c0_i32, %c0_i32_0 : i32, i32
  }
  func.func @transform_4(%arg0: i32) -> (i32, i32) {
    %c0_i32 = arith.constant 0 : i32
    %c0_i32_0 = arith.constant 0 : i32
    %c0_i32_1 = arith.constant 0 : i32
    return %c0_i32, %c0_i32_0 : i32, i32
  }
  func.func @transform_5(%arg0: i32) -> (i32, i32) {
    %c0_i32 = arith.constant 0 : i32
    %c0_i32_0 = arith.constant 0 : i32
    %c0_i32_1 = arith.constant 0 : i32
    return %c0_i32, %c0_i32_0 : i32, i32
  }
  func.func @transform_6(%arg0: i32) -> (i32, i32) {
    %c0_i32 = arith.constant 0 : i32
    %c0_i32_0 = arith.constant 0 : i32
    return %arg0, %c0_i32 : i32, i32
  }
}

</mosaic_0001>

<llo_original>
// kernel: tpu_custom_call.1
$region0: #{tpu_custom_call.1}
  #allocation0 [shape = 'u32[]', space=smem, size = 0x4, offset = 0x4, fixed_abs, tag = 'smem constant byte address 0x4 - core index']
  #allocation1 [shape = 'u32[144,128]{1,0:T(1,128)}', space=vmem, size = 0x12000, scoped, tag = 'internal scratch']
  %s0 = inlined_call_operand.vmem [shape: s32[256,4], index: 0, kind: input, shape index: {}]
  %s1 = inlined_call_operand.vmem [shape: f32[64,32], index: 1, kind: input, shape index: {}]
  %s2 = inlined_call_operand.vmem [shape: f32[2,32,32], index: 2, kind: input, shape index: {}]
  %s3 = inlined_call_operand.vmem [shape: f32[2,32], index: 3, kind: input, shape index: {}]
  %s4 = inlined_call_operand.vmem [shape: f32[32,128], index: 4, kind: input, shape index: {}]
  %s5 = inlined_call_operand.vmem [shape: f32[1,128], index: 5, kind: input, shape index: {}]
  %s6 = inlined_call_operand.hbm [shape: f32[256,128], index: 6, kind: output, shape index: {}]
  %s7 = sld [smem:[#allocation0]]
  $region34: #{tpu_custom_call.1} parent=0
    _
  %s9 = ssub.s32 1, %s7
  %s10 = scalar_select 0, %s9, %s7
  $region1: #{tpu_custom_call.1} parent=0
    #allocation2 [shape = 'u8[131072]{0}', space=vmem, size = 0x20000, scoped, tag = 'output window, operand 0, single buffered']
    #allocation3 [shape = 's32[1]{0}', space=sflag, size = 0x4, scoped, tag = 'scoped memory for tpu_custom_call.1']
    %11 = vsyncpa [#allocation3], 0
    // Predicated region
    $region2: #{tpu_custom_call.1} parent=1 // pred_check
      _
    $region3: #{tpu_custom_call.1} parent=1 // pred_check_branch
      %13 = sbr.rel (0) target = $region5
    $region4: #{tpu_custom_call.1} parent=1 // pred_region
      _
    $region5: #{tpu_custom_call.1} parent=1 // pred_fallthru
      _
    // Predicated region
    $region6: #{tpu_custom_call.1} parent=1 // pred_check
      _
    $region7: #{tpu_custom_call.1} parent=1 // pred_check_branch
      %15 = sbr.rel (0) target = $region9
    $region8: #{tpu_custom_call.1} parent=1 // pred_region
      _
    $region9: #{tpu_custom_call.1} parent=1 // pred_fallthru
      _
    // Predicated region
    $region10: #{tpu_custom_call.1} parent=1 // pred_check
      _
    $region11: #{tpu_custom_call.1} parent=1 // pred_check_branch
      %17 = sbr.rel (0) target = $region13
    $region12: #{tpu_custom_call.1} parent=1 // pred_region
      _
    $region13: #{tpu_custom_call.1} parent=1 // pred_fallthru
      _
    // Predicated region
    $region14: #{tpu_custom_call.1} parent=1 // pred_check
      _
    $region15: #{tpu_custom_call.1} parent=1 // pred_check_branch
      %19 = sbr.rel (0) target = $region17
    $region16: #{tpu_custom_call.1} parent=1 // pred_region
      _
    $region17: #{tpu_custom_call.1} parent=1 // pred_fallthru
      _
    // Predicated region
    $region18: #{tpu_custom_call.1} parent=1 // pred_check
      _
    $region19: #{tpu_custom_call.1} parent=1 // pred_check_branch
      %21 = sbr.rel (0) target = $region21
    $region20: #{tpu_custom_call.1} parent=1 // pred_region
      _
    $region21: #{tpu_custom_call.1} parent=1 // pred_fallthru
      _
    // Predicated region
    $region22: #{tpu_custom_call.1} parent=1 // pred_check
      _
    $region23: #{tpu_custom_call.1} parent=1 // pred_check_branch
      %23 = sbr.rel (0) target = $region25
    $region24: #{tpu_custom_call.1} parent=1 // pred_region
      _
    $region25: #{tpu_custom_call.1} parent=1 // pred_fallthru
      _
    %v24 = vld [vmem:[%s0] sm:$0xff]
    %v25 = vld [vmem:[%s0 + $0x8] sm:$0xff]
    %v26 = vld [vmem:[%s0 + $0x10] sm:$0xff]
    %v27 = vld [vmem:[%s0 + $0x18] sm:$0xff]
    %v28 = vld [vmem:[%s0 + $0x20] sm:$0xff]
    %v29 = vld [vmem:[%s0 + $0x28] sm:$0xff]
    %v30 = vld [vmem:[%s0 + $0x30] sm:$0xff]
    %v31 = vld [vmem:[%s0 + $0x38] sm:$0xff]
    %v32 = vld [vmem:[%s0 + $0x40] sm:$0xff]
    %v33 = vld [vmem:[%s0 + $0x48] sm:$0xff]
    %v34 = vld [vmem:[%s0 + $0x50] sm:$0xff]
    %v35 = vld [vmem:[%s0 + $0x58] sm:$0xff]
    %v36 = vld [vmem:[%s0 + $0x60] sm:$0xff]
    %v37 = vld [vmem:[%s0 + $0x68] sm:$0xff]
    %v38 = vld [vmem:[%s0 + $0x70] sm:$0xff]
    %v39 = vld [vmem:[%s0 + $0x78] sm:$0xff]
    %v40 = vld [vmem:[%s0 + $0x80] sm:$0xff]
    %v41 = vld [vmem:[%s0 + $0x88] sm:$0xff]
    %v42 = vld [vmem:[%s0 + $0x90] sm:$0xff]
    %v43 = vld [vmem:[%s0 + $0x98] sm:$0xff]
    %v44 = vld [vmem:[%s0 + $0xa0] sm:$0xff]
    %v45 = vld [vmem:[%s0 + $0xa8] sm:$0xff]
    %v46 = vld [vmem:[%s0 + $0xb0] sm:$0xff]
    %v47 = vld [vmem:[%s0 + $0xb8] sm:$0xff]
    %v48 = vld [vmem:[%s0 + $0xc0] sm:$0xff]
    %v49 = vld [vmem:[%s0 + $0xc8] sm:$0xff]
    %v50 = vld [vmem:[%s0 + $0xd0] sm:$0xff]
    %v51 = vld [vmem:[%s0 + $0xd8] sm:$0xff]
    %v52 = vld [vmem:[%s0 + $0xe0] sm:$0xff]
    %v53 = vld [vmem:[%s0 + $0xe8] sm:$0xff]
    %v54 = vld [vmem:[%s0 + $0xf0] sm:$0xff]
    %v55 = vld [vmem:[%s0 + $0xf8] sm:$0xff]
    %v56 = vlaneseq
    %v57 = vand.u32 %v56, 127
    %58 = vset.pattern.permute.xlu0 0
    %59 = vperm.xlu0 %58, %v24
    %v60 = vpop.permute.xlu0 %59
    %61 = vset.pattern.permute.xlu0 0
    %62 = vperm.xlu0 %61, %v25
    %v63 = vpop.permute.xlu0 %62
    %64 = vset.pattern.permute.xlu0 0
    %65 = vperm.xlu0 %64, %v26
    %v66 = vpop.permute.xlu0 %65
    %67 = vset.pattern.permute.xlu0 0
    %68 = vperm.xlu0 %67, %v27
    %v69 = vpop.permute.xlu0 %68
    %70 = vset.pattern.permute.xlu0 0
    %71 = vperm.xlu0 %70, %v28
    %v72 = vpop.permute.xlu0 %71
    %73 = vset.pattern.permute.xlu0 0
    %74 = vperm.xlu0 %73, %v29
    %v75 = vpop.permute.xlu0 %74
    %76 = vset.pattern.permute.xlu0 0
    %77 = vperm.xlu0 %76, %v30
    %v78 = vpop.permute.xlu0 %77
    %79 = vset.pattern.permute.xlu0 0
    %80 = vperm.xlu0 %79, %v31
    %v81 = vpop.permute.xlu0 %80
    %82 = vset.pattern.permute.xlu0 0
    %83 = vperm.xlu0 %82, %v32
    %v84 = vpop.permute.xlu0 %83
    %85 = vset.pattern.permute.xlu0 0
    %86 = vperm.xlu0 %85, %v33
    %v87 = vpop.permute.xlu0 %86
    %88 = vset.pattern.permute.xlu0 0
    %89 = vperm.xlu0 %88, %v34
    %v90 = vpop.permute.xlu0 %89
    %91 = vset.pattern.permute.xlu0 0
    %92 = vperm.xlu0 %91, %v35
    %v93 = vpop.permute.xlu0 %92
    %94 = vset.pattern.permute.xlu0 0
    %95 = vperm.xlu0 %94, %v36
    %v96 = vpop.permute.xlu0 %95
    %97 = vset.pattern.permute.xlu0 0
    %98 = vperm.xlu0 %97, %v37
    %v99 = vpop.permute.xlu0 %98
    %100 = vset.pattern.permute.xlu0 0
    %101 = vperm.xlu0 %100, %v38
    %v102 = vpop.permute.xlu0 %101
    %103 = vset.pattern.permute.xlu0 0
    %104 = vperm.xlu0 %103, %v39
    %v105 = vpop.permute.xlu0 %104
    %106 = vset.pattern.permute.xlu0 0
    %107 = vperm.xlu0 %106, %v40
    %v108 = vpop.permute.xlu0 %107
    %109 = vset.pattern.permute.xlu0 0
    %110 = vperm.xlu0 %109, %v41
    %v111 = vpop.permute.xlu0 %110
    %112 = vset.pattern.permute.xlu0 0
    %113 = vperm.xlu0 %112, %v42
    %v114 = vpop.permute.xlu0 %113
    %115 = vset.pattern.permute.xlu0 0
    %116 = vperm.xlu0 %115, %v43
    %v117 = vpop.permute.xlu0 %116
    %118 = vset.pattern.permute.xlu0 0
    %119 = vperm.xlu0 %118, %v44
    %v120 = vpop.permute.xlu0 %119
    %121 = vset.pattern.permute.xlu0 0
    %122 = vperm.xlu0 %121, %v45
    %v123 = vpop.permute.xlu0 %122
    %124 = vset.pattern.permute.xlu0 0
    %125 = vperm.xlu0 %124, %v46
    %v126 = vpop.permute.xlu0 %125
    %127 = vset.pattern.permute.xlu0 0
    %128 = vperm.xlu0 %127, %v47
    %v129 = vpop.permute.xlu0 %128
    %130 = vset.pattern.permute.xlu0 0
    %131 = vperm.xlu0 %130, %v48
    %v132 = vpop.permute.xlu0 %131
    %133 = vset.pattern.permute.xlu0 0
    %134 = vperm.xlu0 %133, %v49
    %v135 = vpop.permute.xlu0 %134
    %136 = vset.pattern.permute.xlu0 0
    %137 = vperm.xlu0 %136, %v50
    %v138 = vpop.permute.xlu0 %137
    %139 = vset.pattern.permute.xlu0 0
    %140 = vperm.xlu0 %139, %v51
    %v141 = vpop.permute.xlu0 %140
    %142 = vset.pattern.permute.xlu0 0
    %143 = vperm.xlu0 %142, %v52
    %v144 = vpop.permute.xlu0 %143
    %145 = vset.pattern.permute.xlu0 0
    %146 = vperm.xlu0 %145, %v53
    %v147 = vpop.permute.xlu0 %146
    %148 = vset.pattern.permute.xlu0 0
    %149 = vperm.xlu0 %148, %v54
    %v150 = vpop.permute.xlu0 %149
    %151 = vset.pattern.permute.xlu0 0
    %152 = vperm.xlu0 %151, %v55
    %v153 = vpop.permute.xlu0 %152
    %vm154 = vcmp.eq.s32.totalorder %v57, %v60
    %vm155 = vcmp.eq.s32.totalorder %v57, %v63
    %vm156 = vcmp.eq.s32.totalorder %v57, %v66
    %vm157 = vcmp.eq.s32.totalorder %v57, %v69
    %vm158 = vcmp.eq.s32.totalorder %v57, %v72
    %vm159 = vcmp.eq.s32.totalorder %v57, %v75
    %vm160 = vcmp.eq.s32.totalorder %v57, %v78
    %vm161 = vcmp.eq.s32.totalorder %v57, %v81
    %vm162 = vcmp.eq.s32.totalorder %v57, %v84
    %vm163 = vcmp.eq.s32.totalorder %v57, %v87
    %vm164 = vcmp.eq.s32.totalorder %v57, %v90
    %vm165 = vcmp.eq.s32.totalorder %v57, %v93
    %vm166 = vcmp.eq.s32.totalorder %v57, %v96
    %vm167 = vcmp.eq.s32.totalorder %v57, %v99
    %vm168 = vcmp.eq.s32.totalorder %v57, %v102
    %vm169 = vcmp.eq.s32.totalorder %v57, %v105
    %vm170 = vcmp.eq.s32.totalorder %v57, %v108
    %vm171 = vcmp.eq.s32.totalorder %v57, %v111
    %vm172 = vcmp.eq.s32.totalorder %v57, %v114
    %vm173 = vcmp.eq.s32.totalorder %v57, %v117
    %vm174 = vcmp.eq.s32.totalorder %v57, %v120
    %vm175 = vcmp.eq.s32.totalorder %v57, %v123
    %vm176 = vcmp.eq.s32.totalorder %v57, %v126
    %vm177 = vcmp.eq.s32.totalorder %v57, %v129
    %vm178 = vcmp.eq.s32.totalorder %v57, %v132
    %vm179 = vcmp.eq.s32.totalorder %v57, %v135
    %vm180 = vcmp.eq.s32.totalorder %v57, %v138
    %vm181 = vcmp.eq.s32.totalorder %v57, %v141
    %vm182 = vcmp.eq.s32.totalorder %v57, %v144
    %vm183 = vcmp.eq.s32.totalorder %v57, %v147
    %vm184 = vcmp.eq.s32.totalorder %v57, %v150
    %vm185 = vcmp.eq.s32.totalorder %v57, %v153
    %v186 = vsel %vm154, 1, 0
    %v187 = vsel %vm155, 1, 0
    %v188 = vsel %vm156, 1, 0
    %v189 = vsel %vm157, 1, 0
    %v190 = vsel %vm158, 1, 0
    %v191 = vsel %vm159, 1, 0
    %v192 = vsel %vm160, 1, 0
    %v193 = vsel %vm161, 1, 0
    %v194 = vsel %vm162, 1, 0
    %v195 = vsel %vm163, 1, 0
    %v196 = vsel %vm164, 1, 0
    %v197 = vsel %vm165, 1, 0
    %v198 = vsel %vm166, 1, 0
    %v199 = vsel %vm167, 1, 0
    %v200 = vsel %vm168, 1, 0
    %v201 = vsel %vm169, 1, 0
    %v202 = vsel %vm170, 1, 0
    %v203 = vsel %vm171, 1, 0
    %v204 = vsel %vm172, 1, 0
    %v205 = vsel %vm173, 1, 0
    %v206 = vsel %vm174, 1, 0
    %v207 = vsel %vm175, 1, 0
    %v208 = vsel %vm176, 1, 0
    %v209 = vsel %vm177, 1, 0
    %v210 = vsel %vm178, 1, 0
    %v211 = vsel %vm179, 1, 0
    %v212 = vsel %vm180, 1, 0
    %v213 = vsel %vm181, 1, 0
    %v214 = vsel %vm182, 1, 0
    %v215 = vsel %vm183, 1, 0
    %v216 = vsel %vm184, 1, 0
    %v217 = vsel %vm185, 1, 0
    %v218 = vcvt.s32.f32 %v186
    %v219 = vcvt.s32.f32 %v187
    %v220 = vcvt.s32.f32 %v188
    %v221 = vcvt.s32.f32 %v189
    %v222 = vcvt.s32.f32 %v190
    %v223 = vcvt.s32.f32 %v191
    %v224 = vcvt.s32.f32 %v192
    %v225 = vcvt.s32.f32 %v193
    %v226 = vcvt.s32.f32 %v194
    %v227 = vcvt.s32.f32 %v195
    %v228 = vcvt.s32.f32 %v196
    %v229 = vcvt.s32.f32 %v197
    %v230 = vcvt.s32.f32 %v198
    %v231 = vcvt.s32.f32 %v199
    %v232 = vcvt.s32.f32 %v200
    %v233 = vcvt.s32.f32 %v201
    %v234 = vcvt.s32.f32 %v202
    %v235 = vcvt.s32.f32 %v203
    %v236 = vcvt.s32.f32 %v204
    %v237 = vcvt.s32.f32 %v205
    %v238 = vcvt.s32.f32 %v206
    %v239 = vcvt.s32.f32 %v207
    %v240 = vcvt.s32.f32 %v208
    %v241 = vcvt.s32.f32 %v209
    %v242 = vcvt.s32.f32 %v210
    %v243 = vcvt.s32.f32 %v211
    %v244 = vcvt.s32.f32 %v212
    %v245 = vcvt.s32.f32 %v213
    %v246 = vcvt.s32.f32 %v214
    %v247 = vcvt.s32.f32 %v215
    %v248 = vcvt.s32.f32 %v216
    %v249 = vcvt.s32.f32 %v217
    %v250 = vadd.f32 %v218, 0.0
    %v251 = vadd.f32 %v219, 0.0
    %v252 = vadd.f32 %v220, 0.0
    %v253 = vadd.f32 %v221, 0.0
    %v254 = vadd.f32 %v222, 0.0
    %v255 = vadd.f32 %v223, 0.0
    %v256 = vadd.f32 %v224, 0.0
    %v257 = vadd.f32 %v225, 0.0
    %v258 = vadd.f32 %v226, 0.0
    %v259 = vadd.f32 %v227, 0.0
    %v260 = vadd.f32 %v228, 0.0
    %v261 = vadd.f32 %v229, 0.0
    %v262 = vadd.f32 %v230, 0.0
    %v263 = vadd.f32 %v231, 0.0
    %v264 = vadd.f32 %v232, 0.0
    %v265 = vadd.f32 %v233, 0.0
    %v266 = vadd.f32 %v234, 0.0
    %v267 = vadd.f32 %v235, 0.0
    %v268 = vadd.f32 %v236, 0.0
    %v269 = vadd.f32 %v237, 0.0
    %v270 = vadd.f32 %v238, 0.0
    %v271 = vadd.f32 %v239, 0.0
    %v272 = vadd.f32 %v240, 0.0
    %v273 = vadd.f32 %v241, 0.0
    %v274 = vadd.f32 %v242, 0.0
    %v275 = vadd.f32 %v243, 0.0
    %v276 = vadd.f32 %v244, 0.0
    %v277 = vadd.f32 %v245, 0.0
    %v278 = vadd.f32 %v246, 0.0
    %v279 = vadd.f32 %v247, 0.0
    %v280 = vadd.f32 %v248, 0.0
    %v281 = vadd.f32 %v249, 0.0
    %v282 = vadd.s32 %v24, 16
    %v283 = vadd.s32 %v25, 16
    %v284 = vadd.s32 %v26, 16
    %v285 = vadd.s32 %v27, 16
    %v286 = vadd.s32 %v28, 16
    %v287 = vadd.s32 %v29, 16
    %v288 = vadd.s32 %v30, 16
    %v289 = vadd.s32 %v31, 16
    %v290 = vadd.s32 %v32, 16
    %v291 = vadd.s32 %v33, 16
    %v292 = vadd.s32 %v34, 16
    %v293 = vadd.s32 %v35, 16
    %v294 = vadd.s32 %v36, 16
    %v295 = vadd.s32 %v37, 16
    %v296 = vadd.s32 %v38, 16
    %v297 = vadd.s32 %v39, 16
    %v298 = vadd.s32 %v40, 16
    %v299 = vadd.s32 %v41, 16
    %v300 = vadd.s32 %v42, 16
    %v301 = vadd.s32 %v43, 16
    %v302 = vadd.s32 %v44, 16
    %v303 = vadd.s32 %v45, 16
    %v304 = vadd.s32 %v46, 16
    %v305 = vadd.s32 %v47, 16
    %v306 = vadd.s32 %v48, 16
    %v307 = vadd.s32 %v49, 16
    %v308 = vadd.s32 %v50, 16
    %v309 = vadd.s32 %v51, 16
    %v310 = vadd.s32 %v52, 16
    %v311 = vadd.s32 %v53, 16
    %v312 = vadd.s32 %v54, 16
    %v313 = vadd.s32 %v55, 16
    %314 = vset.pattern.permute.xlu0 1
    %315 = vperm.xlu0 %314, %v282
    %v316 = vpop.permute.xlu0 %315
    %317 = vset.pattern.permute.xlu0 1
    %318 = vperm.xlu0 %317, %v283
    %v319 = vpop.permute.xlu0 %318
    %320 = vset.pattern.permute.xlu0 1
    %321 = vperm.xlu0 %320, %v284
    %v322 = vpop.permute.xlu0 %321
    %323 = vset.pattern.permute.xlu0 1
    %324 = vperm.xlu0 %323, %v285
    %v325 = vpop.permute.xlu0 %324
    %326 = vset.pattern.permute.xlu0 1
    %327 = vperm.xlu0 %326, %v286
    %v328 = vpop.permute.xlu0 %327
    %329 = vset.pattern.permute.xlu0 1
    %330 = vperm.xlu0 %329, %v287
    %v331 = vpop.permute.xlu0 %330
    %332 = vset.pattern.permute.xlu0 1
    %333 = vperm.xlu0 %332, %v288
    %v334 = vpop.permute.xlu0 %333
    %335 = vset.pattern.permute.xlu0 1
    %336 = vperm.xlu0 %335, %v289
    %v337 = vpop.permute.xlu0 %336
    %338 = vset.pattern.permute.xlu0 1
    %339 = vperm.xlu0 %338, %v290
    %v340 = vpop.permute.xlu0 %339
    %341 = vset.pattern.permute.xlu0 1
    %342 = vperm.xlu0 %341, %v291
    %v343 = vpop.permute.xlu0 %342
    %344 = vset.pattern.permute.xlu0 1
    %345 = vperm.xlu0 %344, %v292
    %v346 = vpop.permute.xlu0 %345
    %347 = vset.pattern.permute.xlu0 1
    %348 = vperm.xlu0 %347, %v293
    %v349 = vpop.permute.xlu0 %348
    %350 = vset.pattern.permute.xlu0 1
    %351 = vperm.xlu0 %350, %v294
    %v352 = vpop.permute.xlu0 %351
    %353 = vset.pattern.permute.xlu0 1
    %354 = vperm.xlu0 %353, %v295
    %v355 = vpop.permute.xlu0 %354
    %356 = vset.pattern.permute.xlu0 1
    %357 = vperm.xlu0 %356, %v296
    %v358 = vpop.permute.xlu0 %357
    %359 = vset.pattern.permute.xlu0 1
    %360 = vperm.xlu0 %359, %v297
    %v361 = vpop.permute.xlu0 %360
    %362 = vset.pattern.permute.xlu0 1
    %363 = vperm.xlu0 %362, %v298
    %v364 = vpop.permute.xlu0 %363
    %365 = vset.pattern.permute.xlu0 1
    %366 = vperm.xlu0 %365, %v299
    %v367 = vpop.permute.xlu0 %366
    %368 = vset.pattern.permute.xlu0 1
    %369 = vperm.xlu0 %368, %v300
    %v370 = vpop.permute.xlu0 %369
    %371 = vset.pattern.permute.xlu0 1
    %372 = vperm.xlu0 %371, %v301
    %v373 = vpop.permute.xlu0 %372
    %374 = vset.pattern.permute.xlu0 1
    %375 = vperm.xlu0 %374, %v302
    %v376 = vpop.permute.xlu0 %375
    %377 = vset.pattern.permute.xlu0 1
    %378 = vperm.xlu0 %377, %v303
    %v379 = vpop.permute.xlu0 %378
    %380 = vset.pattern.permute.xlu0 1
    %381 = vperm.xlu0 %380, %v304
    %v382 = vpop.permute.xlu0 %381
    %383 = vset.pattern.permute.xlu0 1
    %384 = vperm.xlu0 %383, %v305
    %v385 = vpop.permute.xlu0 %384
    %386 = vset.pattern.permute.xlu0 1
    %387 = vperm.xlu0 %386, %v306
    %v388 = vpop.permute.xlu0 %387
    %389 = vset.pattern.permute.xlu0 1
    %390 = vperm.xlu0 %389, %v307
    %v391 = vpop.permute.xlu0 %390
    %392 = vset.pattern.permute.xlu0 1
    %393 = vperm.xlu0 %392, %v308
    %v394 = vpop.permute.xlu0 %393
    %395 = vset.pattern.permute.xlu0 1
    %396 = vperm.xlu0 %395, %v309
    %v397 = vpop.permute.xlu0 %396
    %398 = vset.pattern.permute.xlu0 1
    %399 = vperm.xlu0 %398, %v310
    %v400 = vpop.permute.xlu0 %399
    %401 = vset.pattern.permute.xlu0 1
    %402 = vperm.xlu0 %401, %v311
    %v403 = vpop.permute.xlu0 %402
    %404 = vset.pattern.permute.xlu0 1
    %405 = vperm.xlu0 %404, %v312
    %v406 = vpop.permute.xlu0 %405
    %407 = vset.pattern.permute.xlu0 1
    %408 = vperm.xlu0 %407, %v313
    %v409 = vpop.permute.xlu0 %408
    %vm410 = vcmp.eq.s32.totalorder %v57, %v316
    %vm411 = vcmp.eq.s32.totalorder %v57, %v319
    %vm412 = vcmp.eq.s32.totalorder %v57, %v322
    %vm413 = vcmp.eq.s32.totalorder %v57, %v325
    %vm414 = vcmp.eq.s32.totalorder %v57, %v328
    %vm415 = vcmp.eq.s32.totalorder %v57, %v331
    %vm416 = vcmp.eq.s32.totalorder %v57, %v334
    %vm417 = vcmp.eq.s32.totalorder %v57, %v337
    %vm418 = vcmp.eq.s32.totalorder %v57, %v340
    %vm419 = vcmp.eq.s32.totalorder %v57, %v343
    %vm420 = vcmp.eq.s32.totalorder %v57, %v346
    %vm421 = vcmp.eq.s32.totalorder %v57, %v349
    %vm422 = vcmp.eq.s32.totalorder %v57, %v352
    %vm423 = vcmp.eq.s32.totalorder %v57, %v355
    %vm424 = vcmp.eq.s32.totalorder %v57, %v358
    %vm425 = vcmp.eq.s32.totalorder %v57, %v361
    %vm426 = vcmp.eq.s32.totalorder %v57, %v364
    %vm427 = vcmp.eq.s32.totalorder %v57, %v367
    %vm428 = vcmp.eq.s32.totalorder %v57, %v370
    %vm429 = vcmp.eq.s32.totalorder %v57, %v373
    %vm430 = vcmp.eq.s32.totalorder %v57, %v376
    %vm431 = vcmp.eq.s32.totalorder %v57, %v379
    %vm432 = vcmp.eq.s32.totalorder %v57, %v382
    %vm433 = vcmp.eq.s32.totalorder %v57, %v385
    %vm434 = vcmp.eq.s32.totalorder %v57, %v388
    %vm435 = vcmp.eq.s32.totalorder %v57, %v391
    %vm436 = vcmp.eq.s32.totalorder %v57, %v394
    %vm437 = vcmp.eq.s32.totalorder %v57, %v397
    %vm438 = vcmp.eq.s32.totalorder %v57, %v400
    %vm439 = vcmp.eq.s32.totalorder %v57, %v403
    %vm440 = vcmp.eq.s32.totalorder %v57, %v406
    %vm441 = vcmp.eq.s32.totalorder %v57, %v409
    %v442 = vsel %vm410, 1, 0
    %v443 = vsel %vm411, 1, 0
    %v444 = vsel %vm412, 1, 0
    %v445 = vsel %vm413, 1, 0
    %v446 = vsel %vm414, 1, 0
    %v447 = vsel %vm415, 1, 0
    %v448 = vsel %vm416, 1, 0
    %v449 = vsel %vm417, 1, 0
    %v450 = vsel %vm418, 1, 0
    %v451 = vsel %vm419, 1, 0
    %v452 = vsel %vm420, 1, 0
    %v453 = vsel %vm421, 1, 0
    %v454 = vsel %vm422, 1, 0
    %v455 = vsel %vm423, 1, 0
    %v456 = vsel %vm424, 1, 0
    %v457 = vsel %vm425, 1, 0
    %v458 = vsel %vm426, 1, 0
    %v459 = vsel %vm427, 1, 0
    %v460 = vsel %vm428, 1, 0
    %v461 = vsel %vm429, 1, 0
    %v462 = vsel %vm430, 1, 0
    %v463 = vsel %vm431, 1, 0
    %v464 = vsel %vm432, 1, 0
    %v465 = vsel %vm433, 1, 0
    %v466 = vsel %vm434, 1, 0
    %v467 = vsel %vm435, 1, 0
    %v468 = vsel %vm436, 1, 0
    %v469 = vsel %vm437, 1, 0
    %v470 = vsel %vm438, 1, 0
    %v471 = vsel %vm439, 1, 0
    %v472 = vsel %vm440, 1, 0
    %v473 = vsel %vm441, 1, 0
    %v474 = vcvt.s32.f32 %v442
    %v475 = vcvt.s32.f32 %v443
    %v476 = vcvt.s32.f32 %v444
    %v477 = vcvt.s32.f32 %v445
    %v478 = vcvt.s32.f32 %v446
    %v479 = vcvt.s32.f32 %v447
    %v480 = vcvt.s32.f32 %v448
    %v481 = vcvt.s32.f32 %v449
    %v482 = vcvt.s32.f32 %v450
    %v483 = vcvt.s32.f32 %v451
    %v484 = vcvt.s32.f32 %v452
    %v485 = vcvt.s32.f32 %v453
    %v486 = vcvt.s32.f32 %v454
    %v487 = vcvt.s32.f32 %v455
    %v488 = vcvt.s32.f32 %v456
    %v489 = vcvt.s32.f32 %v457
    %v490 = vcvt.s32.f32 %v458
    %v491 = vcvt.s32.f32 %v459
    %v492 = vcvt.s32.f32 %v460
    %v493 = vcvt.s32.f32 %v461
    %v494 = vcvt.s32.f32 %v462
    %v495 = vcvt.s32.f32 %v463
    %v496 = vcvt.s32.f32 %v464
    %v497 = vcvt.s32.f32 %v465
    %v498 = vcvt.s32.f32 %v466
    %v499 = vcvt.s32.f32 %v467
    %v500 = vcvt.s32.f32 %v468
    %v501 = vcvt.s32.f32 %v469
    %v502 = vcvt.s32.f32 %v470
    %v503 = vcvt.s32.f32 %v471
    %v504 = vcvt.s32.f32 %v472
    %v505 = vcvt.s32.f32 %v473
    %v506 = vadd.f32 %v250, %v474
    %v507 = vadd.f32 %v251, %v475
    %v508 = vadd.f32 %v252, %v476
    %v509 = vadd.f32 %v253, %v477
    %v510 = vadd.f32 %v254, %v478
    %v511 = vadd.f32 %v255, %v479
    %v512 = vadd.f32 %v256, %v480
    %v513 = vadd.f32 %v257, %v481
    %v514 = vadd.f32 %v258, %v482
    %v515 = vadd.f32 %v259, %v483
    %v516 = vadd.f32 %v260, %v484
    %v517 = vadd.f32 %v261, %v485
    %v518 = vadd.f32 %v262, %v486
    %v519 = vadd.f32 %v263, %v487
    %v520 = vadd.f32 %v264, %v488
    %v521 = vadd.f32 %v265, %v489
    %v522 = vadd.f32 %v266, %v490
    %v523 = vadd.f32 %v267, %v491
    %v524 = vadd.f32 %v268, %v492
    %v525 = vadd.f32 %v269, %v493
    %v526 = vadd.f32 %v270, %v494
    %v527 = vadd.f32 %v271, %v495
    %v528 = vadd.f32 %v272, %v496
    %v529 = vadd.f32 %v273, %v497
    %v530 = vadd.f32 %v274, %v498
    %v531 = vadd.f32 %v275, %v499
    %v532 = vadd.f32 %v276, %v500
    %v533 = vadd.f32 %v277, %v501
    %v534 = vadd.f32 %v278, %v502
    %v535 = vadd.f32 %v279, %v503
    %v536 = vadd.f32 %v280, %v504
    %v537 = vadd.f32 %v281, %v505
    %v538 = vadd.s32 %v24, 32
    %v539 = vadd.s32 %v25, 32
    %v540 = vadd.s32 %v26, 32
    %v541 = vadd.s32 %v27, 32
    %v542 = vadd.s32 %v28, 32
    %v543 = vadd.s32 %v29, 32
    %v544 = vadd.s32 %v30, 32
    %v545 = vadd.s32 %v31, 32
    %v546 = vadd.s32 %v32, 32
    %v547 = vadd.s32 %v33, 32
    %v548 = vadd.s32 %v34, 32
    %v549 = vadd.s32 %v35, 32
    %v550 = vadd.s32 %v36, 32
    %v551 = vadd.s32 %v37, 32
    %v552 = vadd.s32 %v38, 32
    %v553 = vadd.s32 %v39, 32
    %v554 = vadd.s32 %v40, 32
    %v555 = vadd.s32 %v41, 32
    %v556 = vadd.s32 %v42, 32
    %v557 = vadd.s32 %v43, 32
    %v558 = vadd.s32 %v44, 32
    %v559 = vadd.s32 %v45, 32
    %v560 = vadd.s32 %v46, 32
    %v561 = vadd.s32 %v47, 32
    %v562 = vadd.s32 %v48, 32
    %v563 = vadd.s32 %v49, 32
    %v564 = vadd.s32 %v50, 32
    %v565 = vadd.s32 %v51, 32
    %v566 = vadd.s32 %v52, 32
    %v567 = vadd.s32 %v53, 32
    %v568 = vadd.s32 %v54, 32
    %v569 = vadd.s32 %v55, 32
    %570 = vset.pattern.permute.xlu0 2
    %571 = vperm.xlu0 %570, %v538
    %v572 = vpop.permute.xlu0 %571
    %573 = vset.pattern.permute.xlu0 2
    %574 = vperm.xlu0 %573, %v539
    %v575 = vpop.permute.xlu0 %574
    %576 = vset.pattern.permute.xlu0 2
    %577 = vperm.xlu0 %576, %v540
    %v578 = vpop.permute.xlu0 %577
    %579 = vset.pattern.permute.xlu0 2
    %580 = vperm.xlu0 %579, %v541
    %v581 = vpop.permute.xlu0 %580
    %582 = vset.pattern.permute.xlu0 2
    %583 = vperm.xlu0 %582, %v542
    %v584 = vpop.permute.xlu0 %583
    %585 = vset.pattern.permute.xlu0 2
    %586 = vperm.xlu0 %585, %v543
    %v587 = vpop.permute.xlu0 %586
    %588 = vset.pattern.permute.xlu0 2
    %589 = vperm.xlu0 %588, %v544
    %v590 = vpop.permute.xlu0 %589
    %591 = vset.pattern.permute.xlu0 2
    %592 = vperm.xlu0 %591, %v545
    %v593 = vpop.permute.xlu0 %592
    %594 = vset.pattern.permute.xlu0 2
    %595 = vperm.xlu0 %594, %v546
    %v596 = vpop.permute.xlu0 %595
    %597 = vset.pattern.permute.xlu0 2
    %598 = vperm.xlu0 %597, %v547
    %v599 = vpop.permute.xlu0 %598
    %600 = vset.pattern.permute.xlu0 2
    %601 = vperm.xlu0 %600, %v548
    %v602 = vpop.permute.xlu0 %601
    %603 = vset.pattern.permute.xlu0 2
    %604 = vperm.xlu0 %603, %v549
    %v605 = vpop.permute.xlu0 %604
    %606 = vset.pattern.permute.xlu0 2
    %607 = vperm.xlu0 %606, %v550
    %v608 = vpop.permute.xlu0 %607
    %609 = vset.pattern.permute.xlu0 2
    %610 = vperm.xlu0 %609, %v551
    %v611 = vpop.permute.xlu0 %610
    %612 = vset.pattern.permute.xlu0 2
    %613 = vperm.xlu0 %612, %v552
    %v614 = vpop.permute.xlu0 %613
    %615 = vset.pattern.permute.xlu0 2
    %616 = vperm.xlu0 %615, %v553
    %v617 = vpop.permute.xlu0 %616
    %618 = vset.pattern.permute.xlu0 2
    %619 = vperm.xlu0 %618, %v554
    %v620 = vpop.permute.xlu0 %619
    %621 = vset.pattern.permute.xlu0 2
    %622 = vperm.xlu0 %621, %v555
    %v623 = vpop.permute.xlu0 %622
    %624 = vset.pattern.permute.xlu0 2
    %625 = vperm.xlu0 %624, %v556
    %v626 = vpop.permute.xlu0 %625
    %627 = vset.pattern.permute.xlu0 2
    %628 = vperm.xlu0 %627, %v557
    %v629 = vpop.permute.xlu0 %628
    %630 = vset.pattern.permute.xlu0 2
    %631 = vperm.xlu0 %630, %v558
    %v632 = vpop.permute.xlu0 %631
    %633 = vset.pattern.permute.xlu0 2
    %634 = vperm.xlu0 %633, %v559
    %v635 = vpop.permute.xlu0 %634
    %636 = vset.pattern.permute.xlu0 2
    %637 = vperm.xlu0 %636, %v560
    %v638 = vpop.permute.xlu0 %637
    %639 = vset.pattern.permute.xlu0 2
    %640 = vperm.xlu0 %639, %v561
    %v641 = vpop.permute.xlu0 %640
    %642 = vset.pattern.permute.xlu0 2
    %643 = vperm.xlu0 %642, %v562
    %v644 = vpop.permute.xlu0 %643
    %645 = vset.pattern.permute.xlu0 2
    %646 = vperm.xlu0 %645, %v563
    %v647 = vpop.permute.xlu0 %646
    %648 = vset.pattern.permute.xlu0 2
    %649 = vperm.xlu0 %648, %v564
    %v650 = vpop.permute.xlu0 %649
    %651 = vset.pattern.permute.xlu0 2
    %652 = vperm.xlu0 %651, %v565
    %v653 = vpop.permute.xlu0 %652
    %654 = vset.pattern.permute.xlu0 2
    %655 = vperm.xlu0 %654, %v566
    %v656 = vpop.permute.xlu0 %655
    %657 = vset.pattern.permute.xlu0 2
    %658 = vperm.xlu0 %657, %v567
    %v659 = vpop.permute.xlu0 %658
    %660 = vset.pattern.permute.xlu0 2
    %661 = vperm.xlu0 %660, %v568
    %v662 = vpop.permute.xlu0 %661
    %663 = vset.pattern.permute.xlu0 2
    %664 = vperm.xlu0 %663, %v569
    %v665 = vpop.permute.xlu0 %664
    %vm666 = vcmp.eq.s32.totalorder %v57, %v572
    %vm667 = vcmp.eq.s32.totalorder %v57, %v575
    %vm668 = vcmp.eq.s32.totalorder %v57, %v578
    %vm669 = vcmp.eq.s32.totalorder %v57, %v581
    %vm670 = vcmp.eq.s32.totalorder %v57, %v584
    %vm671 = vcmp.eq.s32.totalorder %v57, %v587
    %vm672 = vcmp.eq.s32.totalorder %v57, %v590
    %vm673 = vcmp.eq.s32.totalorder %v57, %v593
    %vm674 = vcmp.eq.s32.totalorder %v57, %v596
    %vm675 = vcmp.eq.s32.totalorder %v57, %v599
    %vm676 = vcmp.eq.s32.totalorder %v57, %v602
    %vm677 = vcmp.eq.s32.totalorder %v57, %v605
    %vm678 = vcmp.eq.s32.totalorder %v57, %v608
    %vm679 = vcmp.eq.s32.totalorder %v57, %v611
    %vm680 = vcmp.eq.s32.totalorder %v57, %v614
    %vm681 = vcmp.eq.s32.totalorder %v57, %v617
    %vm682 = vcmp.eq.s32.totalorder %v57, %v620
    %vm683 = vcmp.eq.s32.totalorder %v57, %v623
    %vm684 = vcmp.eq.s32.totalorder %v57, %v626
    %vm685 = vcmp.eq.s32.totalorder %v57, %v629
    %vm686 = vcmp.eq.s32.totalorder %v57, %v632
    %vm687 = vcmp.eq.s32.totalorder %v57, %v635
    %vm688 = vcmp.eq.s32.totalorder %v57, %v638
    %vm689 = vcmp.eq.s32.totalorder %v57, %v641
    %vm690 = vcmp.eq.s32.totalorder %v57, %v644
    %vm691 = vcmp.eq.s32.totalorder %v57, %v647
    %vm692 = vcmp.eq.s32.totalorder %v57, %v650
    %vm693 = vcmp.eq.s32.totalorder %v57, %v653
    %vm694 = vcmp.eq.s32.totalorder %v57, %v656
    %vm695 = vcmp.eq.s32.totalorder %v57, %v659
    %vm696 = vcmp.eq.s32.totalorder %v57, %v662
    %vm697 = vcmp.eq.s32.totalorder %v57, %v665
    %v698 = vsel %vm666, 1, 0
    %v699 = vsel %vm667, 1, 0
    %v700 = vsel %vm668, 1, 0
    %v701 = vsel %vm669, 1, 0
    %v702 = vsel %vm670, 1, 0
    %v703 = vsel %vm671, 1, 0
    %v704 = vsel %vm672, 1, 0
    %v705 = vsel %vm673, 1, 0
    %v706 = vsel %vm674, 1, 0
    %v707 = vsel %vm675, 1, 0
    %v708 = vsel %vm676, 1, 0
    %v709 = vsel %vm677, 1, 0
    %v710 = vsel %vm678, 1, 0
    %v711 = vsel %vm679, 1, 0
    %v712 = vsel %vm680, 1, 0
    %v713 = vsel %vm681, 1, 0
    %v714 = vsel %vm682, 1, 0
    %v715 = vsel %vm683, 1, 0
    %v716 = vsel %vm684, 1, 0
    %v717 = vsel %vm685, 1, 0
    %v718 = vsel %vm686, 1, 0
    %v719 = vsel %vm687, 1, 0
    %v720 = vsel %vm688, 1, 0
    %v721 = vsel %vm689, 1, 0
    %v722 = vsel %vm690, 1, 0
    %v723 = vsel %vm691, 1, 0
    %v724 = vsel %vm692, 1, 0
    %v725 = vsel %vm693, 1, 0
    %v726 = vsel %vm694, 1, 0
    %v727 = vsel %vm695, 1, 0
    %v728 = vsel %vm696, 1, 0
    %v729 = vsel %vm697, 1, 0
    %v730 = vcvt.s32.f32 %v698
    %v731 = vcvt.s32.f32 %v699
    %v732 = vcvt.s32.f32 %v700
    %v733 = vcvt.s32.f32 %v701
    %v734 = vcvt.s32.f32 %v702
    %v735 = vcvt.s32.f32 %v703
    %v736 = vcvt.s32.f32 %v704
    %v737 = vcvt.s32.f32 %v705
    %v738 = vcvt.s32.f32 %v706
    %v739 = vcvt.s32.f32 %v707
    %v740 = vcvt.s32.f32 %v708
    %v741 = vcvt.s32.f32 %v709
    %v742 = vcvt.s32.f32 %v710
    %v743 = vcvt.s32.f32 %v711
    %v744 = vcvt.s32.f32 %v712
    %v745 = vcvt.s32.f32 %v713
    %v746 = vcvt.s32.f32 %v714
    %v747 = vcvt.s32.f32 %v715
    %v748 = vcvt.s32.f32 %v716
    %v749 = vcvt.s32.f32 %v717
    %v750 = vcvt.s32.f32 %v718
    %v751 = vcvt.s32.f32 %v719
    %v752 = vcvt.s32.f32 %v720
    %v753 = vcvt.s32.f32 %v721
    %v754 = vcvt.s32.f32 %v722
    %v755 = vcvt.s32.f32 %v723
    %v756 = vcvt.s32.f32 %v724
    %v757 = vcvt.s32.f32 %v725
    %v758 = vcvt.s32.f32 %v726
    %v759 = vcvt.s32.f32 %v727
    %v760 = vcvt.s32.f32 %v728
    %v761 = vcvt.s32.f32 %v729
    %v762 = vadd.f32 %v506, %v730
    %v763 = vadd.f32 %v507, %v731
    %v764 = vadd.f32 %v508, %v732
    %v765 = vadd.f32 %v509, %v733
    %v766 = vadd.f32 %v510, %v734
    %v767 = vadd.f32 %v511, %v735
    %v768 = vadd.f32 %v512, %v736
    %v769 = vadd.f32 %v513, %v737
    %v770 = vadd.f32 %v514, %v738
    %v771 = vadd.f32 %v515, %v739
    %v772 = vadd.f32 %v516, %v740
    %v773 = vadd.f32 %v517, %v741
    %v774 = vadd.f32 %v518, %v742
    %v775 = vadd.f32 %v519, %v743
    %v776 = vadd.f32 %v520, %v744
    %v777 = vadd.f32 %v521, %v745
    %v778 = vadd.f32 %v522, %v746
    %v779 = vadd.f32 %v523, %v747
    %v780 = vadd.f32 %v524, %v748
    %v781 = vadd.f32 %v525, %v749
    %v782 = vadd.f32 %v526, %v750
    %v783 = vadd.f32 %v527, %v751
    %v784 = vadd.f32 %v528, %v752
    %v785 = vadd.f32 %v529, %v753
    %v786 = vadd.f32 %v530, %v754
    %v787 = vadd.f32 %v531, %v755
    %v788 = vadd.f32 %v532, %v756
    %v789 = vadd.f32 %v533, %v757
    %v790 = vadd.f32 %v534, %v758
    %v791 = vadd.f32 %v535, %v759
    %v792 = vadd.f32 %v536, %v760
    %v793 = vadd.f32 %v537, %v761
    %v794 = vadd.s32 %v24, 48
    %v795 = vadd.s32 %v25, 48
    %v796 = vadd.s32 %v26, 48
    %v797 = vadd.s32 %v27, 48
    %v798 = vadd.s32 %v28, 48
    %v799 = vadd.s32 %v29, 48
    %v800 = vadd.s32 %v30, 48
    %v801 = vadd.s32 %v31, 48
    %v802 = vadd.s32 %v32, 48
    %v803 = vadd.s32 %v33, 48
    %v804 = vadd.s32 %v34, 48
    %v805 = vadd.s32 %v35, 48
    %v806 = vadd.s32 %v36, 48
    %v807 = vadd.s32 %v37, 48
    %v808 = vadd.s32 %v38, 48
    %v809 = vadd.s32 %v39, 48
    %v810 = vadd.s32 %v40, 48
    %v811 = vadd.s32 %v41, 48
    %v812 = vadd.s32 %v42, 48
    %v813 = vadd.s32 %v43, 48
    %v814 = vadd.s32 %v44, 48
    %v815 = vadd.s32 %v45, 48
    %v816 = vadd.s32 %v46, 48
    %v817 = vadd.s32 %v47, 48
    %v818 = vadd.s32 %v48, 48
    %v819 = vadd.s32 %v49, 48
    %v820 = vadd.s32 %v50, 48
    %v821 = vadd.s32 %v51, 48
    %v822 = vadd.s32 %v52, 48
    %v823 = vadd.s32 %v53, 48
    %v824 = vadd.s32 %v54, 48
    %v825 = vadd.s32 %v55, 48
    %826 = vset.pattern.permute.xlu0 3
    %827 = vperm.xlu0 %826, %v794
    %v828 = vpop.permute.xlu0 %827
    %829 = vset.pattern.permute.xlu0 3
    %830 = vperm.xlu0 %829, %v795
    %v831 = vpop.permute.xlu0 %830
    %832 = vset.pattern.permute.xlu0 3
    %833 = vperm.xlu0 %832, %v796
    %v834 = vpop.permute.xlu0 %833
    %835 = vset.pattern.permute.xlu0 3
    %836 = vperm.xlu0 %835, %v797
    %v837 = vpop.permute.xlu0 %836
    %838 = vset.pattern.permute.xlu0 3
    %839 = vperm.xlu0 %838, %v798
    %v840 = vpop.permute.xlu0 %839
    %841 = vset.pattern.permute.xlu0 3
    %842 = vperm.xlu0 %841, %v799
    %v843 = vpop.permute.xlu0 %842
    %844 = vset.pattern.permute.xlu0 3
    %845 = vperm.xlu0 %844, %v800
    %v846 = vpop.permute.xlu0 %845
    %847 = vset.pattern.permute.xlu0 3
    %848 = vperm.xlu0 %847, %v801
    %v849 = vpop.permute.xlu0 %848
    %850 = vset.pattern.permute.xlu0 3
    %851 = vperm.xlu0 %850, %v802
    %v852 = vpop.permute.xlu0 %851
    %853 = vset.pattern.permute.xlu0 3
    %854 = vperm.xlu0 %853, %v803
    %v855 = vpop.permute.xlu0 %854
    %856 = vset.pattern.permute.xlu0 3
    %857 = vperm.xlu0 %856, %v804
    %v858 = vpop.permute.xlu0 %857
    %859 = vset.pattern.permute.xlu0 3
    %860 = vperm.xlu0 %859, %v805
    %v861 = vpop.permute.xlu0 %860
    %862 = vset.pattern.permute.xlu0 3
    %863 = vperm.xlu0 %862, %v806
    %v864 = vpop.permute.xlu0 %863
    %865 = vset.pattern.permute.xlu0 3
    %866 = vperm.xlu0 %865, %v807
    %v867 = vpop.permute.xlu0 %866
    %868 = vset.pattern.permute.xlu0 3
    %869 = vperm.xlu0 %868, %v808
    %v870 = vpop.permute.xlu0 %869
    %871 = vset.pattern.permute.xlu0 3
    %872 = vperm.xlu0 %871, %v809
    %v873 = vpop.permute.xlu0 %872
    %874 = vset.pattern.permute.xlu0 3
    %875 = vperm.xlu0 %874, %v810
    %v876 = vpop.permute.xlu0 %875
    %877 = vset.pattern.permute.xlu0 3
    %878 = vperm.xlu0 %877, %v811
    %v879 = vpop.permute.xlu0 %878
    %880 = vset.pattern.permute.xlu0 3
    %881 = vperm.xlu0 %880, %v812
    %v882 = vpop.permute.xlu0 %881
    %883 = vset.pattern.permute.xlu0 3
    %884 = vperm.xlu0 %883, %v813
    %v885 = vpop.permute.xlu0 %884
    %886 = vset.pattern.permute.xlu0 3
    %887 = vperm.xlu0 %886, %v814
    %v888 = vpop.permute.xlu0 %887
    %889 = vset.pattern.permute.xlu0 3
    %890 = vperm.xlu0 %889, %v815
    %v891 = vpop.permute.xlu0 %890
    %892 = vset.pattern.permute.xlu0 3
    %893 = vperm.xlu0 %892, %v816
    %v894 = vpop.permute.xlu0 %893
    %895 = vset.pattern.permute.xlu0 3
    %896 = vperm.xlu0 %895, %v817
    %v897 = vpop.permute.xlu0 %896
    %898 = vset.pattern.permute.xlu0 3
    %899 = vperm.xlu0 %898, %v818
    %v900 = vpop.permute.xlu0 %899
    %901 = vset.pattern.permute.xlu0 3
    %902 = vperm.xlu0 %901, %v819
    %v903 = vpop.permute.xlu0 %902
    %904 = vset.pattern.permute.xlu0 3
    %905 = vperm.xlu0 %904, %v820
    %v906 = vpop.permute.xlu0 %905
    %907 = vset.pattern.permute.xlu0 3
    %908 = vperm.xlu0 %907, %v821
    %v909 = vpop.permute.xlu0 %908
    %910 = vset.pattern.permute.xlu0 3
    %911 = vperm.xlu0 %910, %v822
    %v912 = vpop.permute.xlu0 %911
    %913 = vset.pattern.permute.xlu0 3
    %914 = vperm.xlu0 %913, %v823
    %v915 = vpop.permute.xlu0 %914
    %916 = vset.pattern.permute.xlu0 3
    %917 = vperm.xlu0 %916, %v824
    %v918 = vpop.permute.xlu0 %917
    %919 = vset.pattern.permute.xlu0 3
    %920 = vperm.xlu0 %919, %v825
    %v921 = vpop.permute.xlu0 %920
    %vm922 = vcmp.eq.s32.totalorder %v57, %v828
    %vm923 = vcmp.eq.s32.totalorder %v57, %v831
    %vm924 = vcmp.eq.s32.totalorder %v57, %v834
    %vm925 = vcmp.eq.s32.totalorder %v57, %v837
    %vm926 = vcmp.eq.s32.totalorder %v57, %v840
    %vm927 = vcmp.eq.s32.totalorder %v57, %v843
    %vm928 = vcmp.eq.s32.totalorder %v57, %v846
    %vm929 = vcmp.eq.s32.totalorder %v57, %v849
    %vm930 = vcmp.eq.s32.totalorder %v57, %v852
    %vm931 = vcmp.eq.s32.totalorder %v57, %v855
    %vm932 = vcmp.eq.s32.totalorder %v57, %v858
    %vm933 = vcmp.eq.s32.totalorder %v57, %v861
    %vm934 = vcmp.eq.s32.totalorder %v57, %v864
    %vm935 = vcmp.eq.s32.totalorder %v57, %v867
    %vm936 = vcmp.eq.s32.totalorder %v57, %v870
    %vm937 = vcmp.eq.s32.totalorder %v57, %v873
    %vm938 = vcmp.eq.s32.totalorder %v57, %v876
    %vm939 = vcmp.eq.s32.totalorder %v57, %v879
    %vm940 = vcmp.eq.s32.totalorder %v57, %v882
    %vm941 = vcmp.eq.s32.totalorder %v57, %v885
    %vm942 = vcmp.eq.s32.totalorder %v57, %v888
    %vm943 = vcmp.eq.s32.totalorder %v57, %v891
    %vm944 = vcmp.eq.s32.totalorder %v57, %v894
    %vm945 = vcmp.eq.s32.totalorder %v57, %v897
    %vm946 = vcmp.eq.s32.totalorder %v57, %v900
    %vm947 = vcmp.eq.s32.totalorder %v57, %v903
    %vm948 = vcmp.eq.s32.totalorder %v57, %v906
    %vm949 = vcmp.eq.s32.totalorder %v57, %v909
    %vm950 = vcmp.eq.s32.totalorder %v57, %v912
    %vm951 = vcmp.eq.s32.totalorder %v57, %v915
    %vm952 = vcmp.eq.s32.totalorder %v57, %v918
    %vm953 = vcmp.eq.s32.totalorder %v57, %v921
    %v954 = vsel %vm922, 1, 0
    %v955 = vsel %vm923, 1, 0
    %v956 = vsel %vm924, 1, 0
    %v957 = vsel %vm925, 1, 0
    %v958 = vsel %vm926, 1, 0
    %v959 = vsel %vm927, 1, 0
    %v960 = vsel %vm928, 1, 0
    %v961 = vsel %vm929, 1, 0
    %v962 = vsel %vm930, 1, 0
    %v963 = vsel %vm931, 1, 0
    %v964 = vsel %vm932, 1, 0
    %v965 = vsel %vm933, 1, 0
    %v966 = vsel %vm934, 1, 0
    %v967 = vsel %vm935, 1, 0
    %v968 = vsel %vm936, 1, 0
    %v969 = vsel %vm937, 1, 0
    %v970 = vsel %vm938, 1, 0
    %v971 = vsel %vm939, 1, 0
    %v972 = vsel %vm940, 1, 0
    %v973 = vsel %vm941, 1, 0
    %v974 = vsel %vm942, 1, 0
    %v975 = vsel %vm943, 1, 0
    %v976 = vsel %vm944, 1, 0
    %v977 = vsel %vm945, 1, 0
    %v978 = vsel %vm946, 1, 0
    %v979 = vsel %vm947, 1, 0
    %v980 = vsel %vm948, 1, 0
    %v981 = vsel %vm949, 1, 0
    %v982 = vsel %vm950, 1, 0
    %v983 = vsel %vm951, 1, 0
    %v984 = vsel %vm952, 1, 0
    %v985 = vsel %vm953, 1, 0
    %v986 = vcvt.s32.f32 %v954
    %v987 = vcvt.s32.f32 %v955
    %v988 = vcvt.s32.f32 %v956
    %v989 = vcvt.s32.f32 %v957
    %v990 = vcvt.s32.f32 %v958
    %v991 = vcvt.s32.f32 %v959
    %v992 = vcvt.s32.f32 %v960
    %v993 = vcvt.s32.f32 %v961
    %v994 = vcvt.s32.f32 %v962
    %v995 = vcvt.s32.f32 %v963
    %v996 = vcvt.s32.f32 %v964
    %v997 = vcvt.s32.f32 %v965
    %v998 = vcvt.s32.f32 %v966
    %v999 = vcvt.s32.f32 %v967
    %v1000 = vcvt.s32.f32 %v968
    %v1001 = vcvt.s32.f32 %v969
    %v1002 = vcvt.s32.f32 %v970
    %v1003 = vcvt.s32.f32 %v971
    %v1004 = vcvt.s32.f32 %v972
    %v1005 = vcvt.s32.f32 %v973
    %v1006 = vcvt.s32.f32 %v974
    %v1007 = vcvt.s32.f32 %v975
    %v1008 = vcvt.s32.f32 %v976
    %v1009 = vcvt.s32.f32 %v977
    %v1010 = vcvt.s32.f32 %v978
    %v1011 = vcvt.s32.f32 %v979
    %v1012 = vcvt.s32.f32 %v980
    %v1013 = vcvt.s32.f32 %v981
    %v1014 = vcvt.s32.f32 %v982
    %v1015 = vcvt.s32.f32 %v983
    %v1016 = vcvt.s32.f32 %v984
    %v1017 = vcvt.s32.f32 %v985
    %v1018 = vadd.f32 %v762, %v986
    %v1019 = vadd.f32 %v763, %v987
    %v1020 = vadd.f32 %v764, %v988
    %v1021 = vadd.f32 %v765, %v989
    %v1022 = vadd.f32 %v766, %v990
    %v1023 = vadd.f32 %v767, %v991
    %v1024 = vadd.f32 %v768, %v992
    %v1025 = vadd.f32 %v769, %v993
    %v1026 = vadd.f32 %v770, %v994
    %v1027 = vadd.f32 %v771, %v995
    %v1028 = vadd.f32 %v772, %v996
    %v1029 = vadd.f32 %v773, %v997
    %v1030 = vadd.f32 %v774, %v998
    %v1031 = vadd.f32 %v775, %v999
    %v1032 = vadd.f32 %v776, %v1000
    %v1033 = vadd.f32 %v777, %v1001
    %v1034 = vadd.f32 %v778, %v1002
    %v1035 = vadd.f32 %v779, %v1003
    %v1036 = vadd.f32 %v780, %v1004
    %v1037 = vadd.f32 %v781, %v1005
    %v1038 = vadd.f32 %v782, %v1006
    %v1039 = vadd.f32 %v783, %v1007
    %v1040 = vadd.f32 %v784, %v1008
    %v1041 = vadd.f32 %v785, %v1009
    %v1042 = vadd.f32 %v786, %v1010
    %v1043 = vadd.f32 %v787, %v1011
    %v1044 = vadd.f32 %v788, %v1012
    %v1045 = vadd.f32 %v789, %v1013
    %v1046 = vadd.f32 %v790, %v1014
    %v1047 = vadd.f32 %v791, %v1015
    %v1048 = vadd.f32 %v792, %v1016
    %v1049 = vadd.f32 %v793, %v1017
    %v1050 = vld [vmem:[%s1] sm:$0xff]
    %v1051 = vld [vmem:[%s1 + $0x8] sm:$0xff]
    %v1052 = vld [vmem:[%s1 + $0x10] sm:$0xff]
    %v1053 = vld [vmem:[%s1 + $0x18] sm:$0xff]
    %v1054 = vld [vmem:[%s1 + $0x20] sm:$0xff]
    %v1055 = vld [vmem:[%s1 + $0x28] sm:$0xff]
    %v1056 = vld [vmem:[%s1 + $0x30] sm:$0xff]
    %v1057 = vld [vmem:[%s1 + $0x38] sm:$0xff]
    %vm1058 = vcmask 523264
    %v1060 = vsel %vm1058, %v1018, 0
    %v1063 = vsel %vm1058, %v1019, 0
    %v1066 = vsel %vm1058, %v1020, 0
    %v1069 = vsel %vm1058, %v1021, 0
    %v1072 = vsel %vm1058, %v1022, 0
    %v1075 = vsel %vm1058, %v1023, 0
    %v1078 = vsel %vm1058, %v1024, 0
    %v1081 = vsel %vm1058, %v1025, 0
    %v1084 = vsel %vm1058, %v1026, 0
    %v1087 = vsel %vm1058, %v1027, 0
    %v1090 = vsel %vm1058, %v1028, 0
    %v1093 = vsel %vm1058, %v1029, 0
    %v1096 = vsel %vm1058, %v1030, 0
    %v1099 = vsel %vm1058, %v1031, 0
    %v1102 = vsel %vm1058, %v1032, 0
    %v1105 = vsel %vm1058, %v1033, 0
    %v1108 = vsel %vm1058, %v1034, 0
    %v1111 = vsel %vm1058, %v1035, 0
    %v1114 = vsel %vm1058, %v1036, 0
    %v1117 = vsel %vm1058, %v1037, 0
    %v1120 = vsel %vm1058, %v1038, 0
    %v1123 = vsel %vm1058, %v1039, 0
    %v1126 = vsel %vm1058, %v1040, 0
    %v1129 = vsel %vm1058, %v1041, 0
    %v1132 = vsel %vm1058, %v1042, 0
    %v1135 = vsel %vm1058, %v1043, 0
    %v1138 = vsel %vm1058, %v1044, 0
    %v1141 = vsel %vm1058, %v1045, 0
    %v1144 = vsel %vm1058, %v1046, 0
    %v1147 = vsel %vm1058, %v1047, 0
    %v1150 = vsel %vm1058, %v1048, 0
    %v1153 = vsel %vm1058, %v1049, 0
    %1155 = vmatprep.subr.mxu0 0.0
    %1156 = vmatpush1.msra.mxu0 0.0
    %1157 = vmatprep.subr.mxu0 0.0
    %1158 = vmatpush1.msra.mxu0 0.0
    %1159 = vmatprep.subr.mxu0 0.0
    %1160 = vmatpush1.msra.mxu0 0.0
    %1161 = vmatprep.subr.mxu0 0.0
    %1162 = vmatpush1.msra.mxu0 0.0
    %1163 = vmatprep.subr.mxu0 0.0
    %1164 = vmatpush1.msra.mxu0 0.0
    %1165 = vmatprep.subr.mxu0 0.0
    %1166 = vmatpush1.msra.mxu0 0.0
    %1167 = vmatprep.subr.mxu0 0.0
    %1168 = vmatpush1.msra.mxu0 0.0
    %1169 = vmatprep.subr.mxu0 0.0
    %1170 = vmatpush1.msra.mxu0 0.0
    %1171 = vmatprep.subr.mxu0 0.0
    %1172 = vmatpush1.msra.mxu0 %v1057
    %1173 = vmatprep.subr.mxu0 0.0
    %1174 = vmatpush1.msra.mxu0 %v1056
    %1175 = vmatprep.subr.mxu0 0.0
    %1176 = vmatpush1.msra.mxu0 %v1055
    %1177 = vmatprep.subr.mxu0 0.0
    %1178 = vmatpush1.msra.mxu0 %v1054
    %1179 = vmatprep.subr.mxu0 0.0
    %1180 = vmatpush1.msra.mxu0 %v1053
    %1181 = vmatprep.subr.mxu0 0.0
    %1182 = vmatpush1.msra.mxu0 %v1052
    %1183 = vmatprep.subr.mxu0 0.0
    %1184 = vmatpush1.msra.mxu0 %v1051
    %1185 = vmatprep.subr.mxu0 0.0
    %1186 = vmatpush1.msra.mxu0 %v1050
    %1187 = vmatprep.subr.mxu0 0.0
    %1188 = vmatpush2.msra.mxu0 0.0
    %1189 = vmatprep.subr.mxu0 0.0
    %1190 = vmatpush2.msra.mxu0 0.0
    %1191 = vmatprep.subr.mxu0 0.0
    %1192 = vmatpush2.msra.mxu0 0.0
    %1193 = vmatprep.subr.mxu0 0.0
    %1194 = vmatpush2.msra.mxu0 0.0
    %1195 = vmatprep.subr.mxu0 0.0
    %1196 = vmatpush2.msra.mxu0 0.0
    %1197 = vmatprep.subr.mxu0 0.0
    %1198 = vmatpush2.msra.mxu0 0.0
    %1199 = vmatprep.subr.mxu0 0.0
    %1200 = vmatpush2.msra.mxu0 0.0
    %1201 = vmatprep.subr.mxu0 0.0
    %1202 = vmatpush2.msra.mxu0 0.0
    %1203 = vmatprep.subr.mxu0 0.0
    %1204 = vmatpush2.msra.mxu0 0.0
    %1205 = vmatprep.subr.mxu0 0.0
    %1206 = vmatpush2.msra.mxu0 0.0
    %1207 = vmatprep.subr.mxu0 0.0
    %1208 = vmatpush2.msra.mxu0 0.0
    %1209 = vmatprep.subr.mxu0 0.0
    %1210 = vmatpush2.msra.mxu0 0.0
    %1211 = vmatprep.subr.mxu0 0.0
    %1212 = vmatpush2.msra.mxu0 0.0
    %1213 = vmatprep.subr.mxu0 0.0
    %1214 = vmatpush2.msra.mxu0 0.0
    %1215 = vmatprep.subr.mxu0 0.0
    %1216 = vmatpush2.msra.mxu0 0.0
    %1217 = vmatprep.subr.mxu0 0.0
    %1218 = vmatpush2.msra.mxu0 0.0
    %1219 = vmatprep.mubr.f32.mxu0 0.0
    %1220 = vmatmul.mubr.f32.gmra.mxu0 %v1060
    %v1221 = vpop.f32.mrf.mxu0
    %v1222 = vadd.f32 0.0, %v1221
    %v1223 = vpop.f32.mrf.mxu0
    %1224 = vmatprep.mubr.f32.mxu0 0.0
    %1225 = vmatmul.mubr.f32.gmra.mxu0 %v1063
    %v1226 = vpop.f32.mrf.mxu0
    %v1227 = vadd.f32 0.0, %v1226
    %v1228 = vpop.f32.mrf.mxu0
    %1229 = vmatprep.mubr.f32.mxu0 0.0
    %1230 = vmatmul.mubr.f32.gmra.mxu0 %v1066
    %v1231 = vpop.f32.mrf.mxu0
    %v1232 = vadd.f32 0.0, %v1231
    %v1233 = vpop.f32.mrf.mxu0
    %1234 = vmatprep.mubr.f32.mxu0 0.0
    %1235 = vmatmul.mubr.f32.gmra.mxu0 %v1069
    %v1236 = vpop.f32.mrf.mxu0
    %v1237 = vadd.f32 0.0, %v1236
    %v1238 = vpop.f32.mrf.mxu0
    %1239 = vmatprep.mubr.f32.mxu0 0.0
    %1240 = vmatmul.mubr.f32.gmra.mxu0 %v1072
    %v1241 = vpop.f32.mrf.mxu0
    %v1242 = vadd.f32 0.0, %v1241
    %v1243 = vpop.f32.mrf.mxu0
    %1244 = vmatprep.mubr.f32.mxu0 0.0
    %1245 = vmatmul.mubr.f32.gmra.mxu0 %v1075
    %v1246 = vpop.f32.mrf.mxu0
    %v1247 = vadd.f32 0.0, %v1246
    %v1248 = vpop.f32.mrf.mxu0
    %1249 = vmatprep.mubr.f32.mxu0 0.0
    %1250 = vmatmul.mubr.f32.gmra.mxu0 %v1078
    %v1251 = vpop.f32.mrf.mxu0
    %v1252 = vadd.f32 0.0, %v1251
    %v1253 = vpop.f32.mrf.mxu0
    %1254 = vmatprep.mubr.f32.mxu0 0.0
    %1255 = vmatmul.mubr.f32.gmra.mxu0 %v1081
    %v1256 = vpop.f32.mrf.mxu0
    %v1257 = vadd.f32 0.0, %v1256
    %v1258 = vpop.f32.mrf.mxu0
    %1259 = vmatprep.mubr.f32.mxu0 0.0
    %1260 = vmatmul.mubr.f32.gmra.mxu0 %v1084
    %v1261 = vpop.f32.mrf.mxu0
    %v1262 = vadd.f32 0.0, %v1261
    %v1263 = vpop.f32.mrf.mxu0
    %1264 = vmatprep.mubr.f32.mxu0 0.0
    %1265 = vmatmul.mubr.f32.gmra.mxu0 %v1087
    %v1266 = vpop.f32.mrf.mxu0
    %v1267 = vadd.f32 0.0, %v1266
    %v1268 = vpop.f32.mrf.mxu0
    %1269 = vmatprep.mubr.f32.mxu0 0.0
    %1270 = vmatmul.mubr.f32.gmra.mxu0 %v1090
    %v1271 = vpop.f32.mrf.mxu0
    %v1272 = vadd.f32 0.0, %v1271
    %v1273 = vpop.f32.mrf.mxu0
    %1274 = vmatprep.mubr.f32.mxu0 0.0
    %1275 = vmatmul.mubr.f32.gmra.mxu0 %v1093
    %v1276 = vpop.f32.mrf.mxu0
    %v1277 = vadd.f32 0.0, %v1276
    %v1278 = vpop.f32.mrf.mxu0
    %1279 = vmatprep.mubr.f32.mxu0 0.0
    %1280 = vmatmul.mubr.f32.gmra.mxu0 %v1096
    %v1281 = vpop.f32.mrf.mxu0
    %v1282 = vadd.f32 0.0, %v1281
    %v1283 = vpop.f32.mrf.mxu0
    %1284 = vmatprep.mubr.f32.mxu0 0.0
    %1285 = vmatmul.mubr.f32.gmra.mxu0 %v1099
    %v1286 = vpop.f32.mrf.mxu0
    %v1287 = vadd.f32 0.0, %v1286
    %v1288 = vpop.f32.mrf.mxu0
    %1289 = vmatprep.mubr.f32.mxu0 0.0
    %1290 = vmatmul.mubr.f32.gmra.mxu0 %v1102
    %v1291 = vpop.f32.mrf.mxu0
    %v1292 = vadd.f32 0.0, %v1291
    %v1293 = vpop.f32.mrf.mxu0
    %1294 = vmatprep.mubr.f32.mxu0 0.0
    %1295 = vmatmul.mubr.f32.gmra.mxu0 %v1105
    %v1296 = vpop.f32.mrf.mxu0
    %v1297 = vadd.f32 0.0, %v1296
    %v1298 = vpop.f32.mrf.mxu0
    %1299 = vmatprep.mubr.f32.mxu0 0.0
    %1300 = vmatmul.mubr.f32.gmra.mxu0 %v1108
    %v1301 = vpop.f32.mrf.mxu0
    %v1302 = vadd.f32 0.0, %v1301
    %v1303 = vpop.f32.mrf.mxu0
    %1304 = vmatprep.mubr.f32.mxu0 0.0
    %1305 = vmatmul.mubr.f32.gmra.mxu0 %v1111
    %v1306 = vpop.f32.mrf.mxu0
    %v1307 = vadd.f32 0.0, %v1306
    %v1308 = vpop.f32.mrf.mxu0
    %1309 = vmatprep.mubr.f32.mxu0 0.0
    %1310 = vmatmul.mubr.f32.gmra.mxu0 %v1114
    %v1311 = vpop.f32.mrf.mxu0
    %v1312 = vadd.f32 0.0, %v1311
    %v1313 = vpop.f32.mrf.mxu0
    %1314 = vmatprep.mubr.f32.mxu0 0.0
    %1315 = vmatmul.mubr.f32.gmra.mxu0 %v1117
    %v1316 = vpop.f32.mrf.mxu0
    %v1317 = vadd.f32 0.0, %v1316
    %v1318 = vpop.f32.mrf.mxu0
    %1319 = vmatprep.mubr.f32.mxu0 0.0
    %1320 = vmatmul.mubr.f32.gmra.mxu0 %v1120
    %v1321 = vpop.f32.mrf.mxu0
    %v1322 = vadd.f32 0.0, %v1321
    %v1323 = vpop.f32.mrf.mxu0
    %1324 = vmatprep.mubr.f32.mxu0 0.0
    %1325 = vmatmul.mubr.f32.gmra.mxu0 %v1123
    %v1326 = vpop.f32.mrf.mxu0
    %v1327 = vadd.f32 0.0, %v1326
    %v1328 = vpop.f32.mrf.mxu0
    %1329 = vmatprep.mubr.f32.mxu0 0.0
    %1330 = vmatmul.mubr.f32.gmra.mxu0 %v1126
    %v1331 = vpop.f32.mrf.mxu0
    %v1332 = vadd.f32 0.0, %v1331
    %v1333 = vpop.f32.mrf.mxu0
    %1334 = vmatprep.mubr.f32.mxu0 0.0
    %1335 = vmatmul.mubr.f32.gmra.mxu0 %v1129
    %v1336 = vpop.f32.mrf.mxu0
    %v1337 = vadd.f32 0.0, %v1336
    %v1338 = vpop.f32.mrf.mxu0
    %1339 = vmatprep.mubr.f32.mxu0 0.0
    %1340 = vmatmul.mubr.f32.gmra.mxu0 %v1132
    %v1341 = vpop.f32.mrf.mxu0
    %v1342 = vadd.f32 0.0, %v1341
    %v1343 = vpop.f32.mrf.mxu0
    %1344 = vmatprep.mubr.f32.mxu0 0.0
    %1345 = vmatmul.mubr.f32.gmra.mxu0 %v1135
    %v1346 = vpop.f32.mrf.mxu0
    %v1347 = vadd.f32 0.0, %v1346
    %v1348 = vpop.f32.mrf.mxu0
    %1349 = vmatprep.mubr.f32.mxu0 0.0
    %1350 = vmatmul.mubr.f32.gmra.mxu0 %v1138
    %v1351 = vpop.f32.mrf.mxu0
    %v1352 = vadd.f32 0.0, %v1351
    %v1353 = vpop.f32.mrf.mxu0
    %1354 = vmatprep.mubr.f32.mxu0 0.0
    %1355 = vmatmul.mubr.f32.gmra.mxu0 %v1141
    %v1356 = vpop.f32.mrf.mxu0
    %v1357 = vadd.f32 0.0, %v1356
    %v1358 = vpop.f32.mrf.mxu0
    %1359 = vmatprep.mubr.f32.mxu0 0.0
    %1360 = vmatmul.mubr.f32.gmra.mxu0 %v1144
    %v1361 = vpop.f32.mrf.mxu0
    %v1362 = vadd.f32 0.0, %v1361
    %v1363 = vpop.f32.mrf.mxu0
    %1364 = vmatprep.mubr.f32.mxu0 0.0
    %1365 = vmatmul.mubr.f32.gmra.mxu0 %v1147
    %v1366 = vpop.f32.mrf.mxu0
    %v1367 = vadd.f32 0.0, %v1366
    %v1368 = vpop.f32.mrf.mxu0
    %1369 = vmatprep.mubr.f32.mxu0 0.0
    %1370 = vmatmul.mubr.f32.gmra.mxu0 %v1150
    %v1371 = vpop.f32.mrf.mxu0
    %v1372 = vadd.f32 0.0, %v1371
    %v1373 = vpop.f32.mrf.mxu0
    %1374 = vmatprep.mubr.f32.mxu0 0.0
    %1375 = vmatmul.mubr.f32.gmra.mxu0 %v1153
    %v1376 = vpop.f32.mrf.mxu0
    %v1377 = vadd.f32 0.0, %v1376
    %v1378 = vpop.f32.mrf.mxu0
    %1379 = vdwg.mxu0
    %v1380 = vld [vmem:[%s2] sm:$0xff]
    %v1381 = vld [vmem:[%s2 + $0x8] sm:$0xff]
    %v1382 = vld [vmem:[%s2 + $0x10] sm:$0xff]
    %v1383 = vld [vmem:[%s2 + $0x18] sm:$0xff]
    %v1384 = vld [vmem:[%s3] sm:$0x1]
    %v1385 = vlaneseq
    %v1386 = vshrl.u32 %v1385, 7
    %v1387 = vsub.s32 0, %v1386
    %v1388 = vrot.slane %v1384, %v1387
    %vm1389 = vcmask 261120
    %v1391 = vsel %vm1389, %v1222, 0
    %v1394 = vsel %vm1389, %v1227, 0
    %v1397 = vsel %vm1389, %v1232, 0
    %v1400 = vsel %vm1389, %v1237, 0
    %v1403 = vsel %vm1389, %v1242, 0
    %v1406 = vsel %vm1389, %v1247, 0
    %v1409 = vsel %vm1389, %v1252, 0
    %v1412 = vsel %vm1389, %v1257, 0
    %v1415 = vsel %vm1389, %v1262, 0
    %v1418 = vsel %vm1389, %v1267, 0
    %v1421 = vsel %vm1389, %v1272, 0
    %v1424 = vsel %vm1389, %v1277, 0
    %v1427 = vsel %vm1389, %v1282, 0
    %v1430 = vsel %vm1389, %v1287, 0
    %v1433 = vsel %vm1389, %v1292, 0
    %v1436 = vsel %vm1389, %v1297, 0
    %v1439 = vsel %vm1389, %v1302, 0
    %v1442 = vsel %vm1389, %v1307, 0
    %v1445 = vsel %vm1389, %v1312, 0
    %v1448 = vsel %vm1389, %v1317, 0
    %v1451 = vsel %vm1389, %v1322, 0
    %v1454 = vsel %vm1389, %v1327, 0
    %v1457 = vsel %vm1389, %v1332, 0
    %v1460 = vsel %vm1389, %v1337, 0
    %v1463 = vsel %vm1389, %v1342, 0
    %v1466 = vsel %vm1389, %v1347, 0
    %v1469 = vsel %vm1389, %v1352, 0
    %v1472 = vsel %vm1389, %v1357, 0
    %v1475 = vsel %vm1389, %v1362, 0
    %v1478 = vsel %vm1389, %v1367, 0
    %v1481 = vsel %vm1389, %v1372, 0
    %v1484 = vsel %vm1389, %v1377, 0
    %1486 = vmatprep.subr.mxu0 0.0
    %1487 = vmatpush1.msra.mxu0 0.0
    %1488 = vmatprep.subr.mxu0 0.0
    %1489 = vmatpush1.msra.mxu0 0.0
    %1490 = vmatprep.subr.mxu0 0.0
    %1491 = vmatpush1.msra.mxu0 0.0
    %1492 = vmatprep.subr.mxu0 0.0
    %1493 = vmatpush1.msra.mxu0 0.0
    %1494 = vmatprep.subr.mxu0 0.0
    %1495 = vmatpush1.msra.mxu0 0.0
    %1496 = vmatprep.subr.mxu0 0.0
    %1497 = vmatpush1.msra.mxu0 0.0
    %1498 = vmatprep.subr.mxu0 0.0
    %1499 = vmatpush1.msra.mxu0 0.0
    %1500 = vmatprep.subr.mxu0 0.0
    %1501 = vmatpush1.msra.mxu0 0.0
    %1502 = vmatprep.subr.mxu0 0.0
    %1503 = vmatpush1.msra.mxu0 0.0
    %1504 = vmatprep.subr.mxu0 0.0
    %1505 = vmatpush1.msra.mxu0 0.0
    %1506 = vmatprep.subr.mxu0 0.0
    %1507 = vmatpush1.msra.mxu0 0.0
    %1508 = vmatprep.subr.mxu0 0.0
    %1509 = vmatpush1.msra.mxu0 0.0
    %1510 = vmatprep.subr.mxu0 0.0
    %1511 = vmatpush1.msra.mxu0 %v1383
    %1512 = vmatprep.subr.mxu0 0.0
    %1513 = vmatpush1.msra.mxu0 %v1382
    %1514 = vmatprep.subr.mxu0 0.0
    %1515 = vmatpush1.msra.mxu0 %v1381
    %1516 = vmatprep.subr.mxu0 0.0
    %1517 = vmatpush1.msra.mxu0 %v1380
    %1518 = vmatprep.subr.mxu0 0.0
    %1519 = vmatpush2.msra.mxu0 0.0
    %1520 = vmatprep.subr.mxu0 0.0
    %1521 = vmatpush2.msra.mxu0 0.0
    %1522 = vmatprep.subr.mxu0 0.0
    %1523 = vmatpush2.msra.mxu0 0.0
    %1524 = vmatprep.subr.mxu0 0.0
    %1525 = vmatpush2.msra.mxu0 0.0
    %1526 = vmatprep.subr.mxu0 0.0
    %1527 = vmatpush2.msra.mxu0 0.0
    %1528 = vmatprep.subr.mxu0 0.0
    %1529 = vmatpush2.msra.mxu0 0.0
    %1530 = vmatprep.subr.mxu0 0.0
    %1531 = vmatpush2.msra.mxu0 0.0
    %1532 = vmatprep.subr.mxu0 0.0
    %1533 = vmatpush2.msra.mxu0 0.0
    %1534 = vmatprep.subr.mxu0 0.0
    %1535 = vmatpush2.msra.mxu0 0.0
    %1536 = vmatprep.subr.mxu0 0.0
    %1537 = vmatpush2.msra.mxu0 0.0
    %1538 = vmatprep.subr.mxu0 0.0
    %1539 = vmatpush2.msra.mxu0 0.0
    %1540 = vmatprep.subr.mxu0 0.0
    %1541 = vmatpush2.msra.mxu0 0.0
    %1542 = vmatprep.subr.mxu0 0.0
    %1543 = vmatpush2.msra.mxu0 0.0
    %1544 = vmatprep.subr.mxu0 0.0
    %1545 = vmatpush2.msra.mxu0 0.0
    %1546 = vmatprep.subr.mxu0 0.0
    %1547 = vmatpush2.msra.mxu0 0.0
    %1548 = vmatprep.subr.mxu0 0.0
    %1549 = vmatpush2.msra.mxu0 0.0
    %1550 = vmatprep.mubr.f32.mxu0 0.0
    %1551 = vmatmul.mubr.f32.gmra.mxu0 %v1391
    %v1552 = vpop.f32.mrf.mxu0
    %v1553 = vadd.f32 %v1388, %v1552
    %v1554 = vpop.f32.mrf.mxu0
    %1555 = vmatprep.mubr.f32.mxu0 0.0
    %1556 = vmatmul.mubr.f32.gmra.mxu0 %v1394
    %v1557 = vpop.f32.mrf.mxu0
    %v1558 = vadd.f32 %v1388, %v1557
    %v1559 = vpop.f32.mrf.mxu0
    %1560 = vmatprep.mubr.f32.mxu0 0.0
    %1561 = vmatmul.mubr.f32.gmra.mxu0 %v1397
    %v1562 = vpop.f32.mrf.mxu0
    %v1563 = vadd.f32 %v1388, %v1562
    %v1564 = vpop.f32.mrf.mxu0
    %1565 = vmatprep.mubr.f32.mxu0 0.0
    %1566 = vmatmul.mubr.f32.gmra.mxu0 %v1400
    %v1567 = vpop.f32.mrf.mxu0
    %v1568 = vadd.f32 %v1388, %v1567
    %v1569 = vpop.f32.mrf.mxu0
    %1570 = vmatprep.mubr.f32.mxu0 0.0
    %1571 = vmatmul.mubr.f32.gmra.mxu0 %v1403
    %v1572 = vpop.f32.mrf.mxu0
    %v1573 = vadd.f32 %v1388, %v1572
    %v1574 = vpop.f32.mrf.mxu0
    %1575 = vmatprep.mubr.f32.mxu0 0.0
    %1576 = vmatmul.mubr.f32.gmra.mxu0 %v1406
    %v1577 = vpop.f32.mrf.mxu0
    %v1578 = vadd.f32 %v1388, %v1577
    %v1579 = vpop.f32.mrf.mxu0
    %1580 = vmatprep.mubr.f32.mxu0 0.0
    %1581 = vmatmul.mubr.f32.gmra.mxu0 %v1409
    %v1582 = vpop.f32.mrf.mxu0
    %v1583 = vadd.f32 %v1388, %v1582
    %v1584 = vpop.f32.mrf.mxu0
    %1585 = vmatprep.mubr.f32.mxu0 0.0
    %1586 = vmatmul.mubr.f32.gmra.mxu0 %v1412
    %v1587 = vpop.f32.mrf.mxu0
    %v1588 = vadd.f32 %v1388, %v1587
    %v1589 = vpop.f32.mrf.mxu0
    %1590 = vmatprep.mubr.f32.mxu0 0.0
    %1591 = vmatmul.mubr.f32.gmra.mxu0 %v1415
    %v1592 = vpop.f32.mrf.mxu0
    %v1593 = vadd.f32 %v1388, %v1592
    %v1594 = vpop.f32.mrf.mxu0
    %1595 = vmatprep.mubr.f32.mxu0 0.0
    %1596 = vmatmul.mubr.f32.gmra.mxu0 %v1418
    %v1597 = vpop.f32.mrf.mxu0
    %v1598 = vadd.f32 %v1388, %v1597
    %v1599 = vpop.f32.mrf.mxu0
    %1600 = vmatprep.mubr.f32.mxu0 0.0
    %1601 = vmatmul.mubr.f32.gmra.mxu0 %v1421
    %v1602 = vpop.f32.mrf.mxu0
    %v1603 = vadd.f32 %v1388, %v1602
    %v1604 = vpop.f32.mrf.mxu0
    %1605 = vmatprep.mubr.f32.mxu0 0.0
    %1606 = vmatmul.mubr.f32.gmra.mxu0 %v1424
    %v1607 = vpop.f32.mrf.mxu0
    %v1608 = vadd.f32 %v1388, %v1607
    %v1609 = vpop.f32.mrf.mxu0
    %1610 = vmatprep.mubr.f32.mxu0 0.0
    %1611 = vmatmul.mubr.f32.gmra.mxu0 %v1427
    %v1612 = vpop.f32.mrf.mxu0
    %v1613 = vadd.f32 %v1388, %v1612
    %v1614 = vpop.f32.mrf.mxu0
    %1615 = vmatprep.mubr.f32.mxu0 0.0
    %1616 = vmatmul.mubr.f32.gmra.mxu0 %v1430
    %v1617 = vpop.f32.mrf.mxu0
    %v1618 = vadd.f32 %v1388, %v1617
    %v1619 = vpop.f32.mrf.mxu0
    %1620 = vmatprep.mubr.f32.mxu0 0.0
    %1621 = vmatmul.mubr.f32.gmra.mxu0 %v1433
    %v1622 = vpop.f32.mrf.mxu0
    %v1623 = vadd.f32 %v1388, %v1622
    %v1624 = vpop.f32.mrf.mxu0
    %1625 = vmatprep.mubr.f32.mxu0 0.0
    %1626 = vmatmul.mubr.f32.gmra.mxu0 %v1436
    %v1627 = vpop.f32.mrf.mxu0
    %v1628 = vadd.f32 %v1388, %v1627
    %v1629 = vpop.f32.mrf.mxu0
    %1630 = vmatprep.mubr.f32.mxu0 0.0
    %1631 = vmatmul.mubr.f32.gmra.mxu0 %v1439
    %v1632 = vpop.f32.mrf.mxu0
    %v1633 = vadd.f32 %v1388, %v1632
    %v1634 = vpop.f32.mrf.mxu0
    %1635 = vmatprep.mubr.f32.mxu0 0.0
    %1636 = vmatmul.mubr.f32.gmra.mxu0 %v1442
    %v1637 = vpop.f32.mrf.mxu0
    %v1638 = vadd.f32 %v1388, %v1637
    %v1639 = vpop.f32.mrf.mxu0
    %1640 = vmatprep.mubr.f32.mxu0 0.0
    %1641 = vmatmul.mubr.f32.gmra.mxu0 %v1445
    %v1642 = vpop.f32.mrf.mxu0
    %v1643 = vadd.f32 %v1388, %v1642
    %v1644 = vpop.f32.mrf.mxu0
    %1645 = vmatprep.mubr.f32.mxu0 0.0
    %1646 = vmatmul.mubr.f32.gmra.mxu0 %v1448
    %v1647 = vpop.f32.mrf.mxu0
    %v1648 = vadd.f32 %v1388, %v1647
    %v1649 = vpop.f32.mrf.mxu0
    %1650 = vmatprep.mubr.f32.mxu0 0.0
    %1651 = vmatmul.mubr.f32.gmra.mxu0 %v1451
    %v1652 = vpop.f32.mrf.mxu0
    %v1653 = vadd.f32 %v1388, %v1652
    %v1654 = vpop.f32.mrf.mxu0
    %1655 = vmatprep.mubr.f32.mxu0 0.0
    %1656 = vmatmul.mubr.f32.gmra.mxu0 %v1454
    %v1657 = vpop.f32.mrf.mxu0
    %v1658 = vadd.f32 %v1388, %v1657
    %v1659 = vpop.f32.mrf.mxu0
    %1660 = vmatprep.mubr.f32.mxu0 0.0
    %1661 = vmatmul.mubr.f32.gmra.mxu0 %v1457
    %v1662 = vpop.f32.mrf.mxu0
    %v1663 = vadd.f32 %v1388, %v1662
    %v1664 = vpop.f32.mrf.mxu0
    %1665 = vmatprep.mubr.f32.mxu0 0.0
    %1666 = vmatmul.mubr.f32.gmra.mxu0 %v1460
    %v1667 = vpop.f32.mrf.mxu0
    %v1668 = vadd.f32 %v1388, %v1667
    %v1669 = vpop.f32.mrf.mxu0
    %1670 = vmatprep.mubr.f32.mxu0 0.0
    %1671 = vmatmul.mubr.f32.gmra.mxu0 %v1463
    %v1672 = vpop.f32.mrf.mxu0
    %v1673 = vadd.f32 %v1388, %v1672
    %v1674 = vpop.f32.mrf.mxu0
    %1675 = vmatprep.mubr.f32.mxu0 0.0
    %1676 = vmatmul.mubr.f32.gmra.mxu0 %v1466
    %v1677 = vpop.f32.mrf.mxu0
    %v1678 = vadd.f32 %v1388, %v1677
    %v1679 = vpop.f32.mrf.mxu0
    %1680 = vmatprep.mubr.f32.mxu0 0.0
    %1681 = vmatmul.mubr.f32.gmra.mxu0 %v1469
    %v1682 = vpop.f32.mrf.mxu0
    %v1683 = vadd.f32 %v1388, %v1682
    %v1684 = vpop.f32.mrf.mxu0
    %1685 = vmatprep.mubr.f32.mxu0 0.0
    %1686 = vmatmul.mubr.f32.gmra.mxu0 %v1472
    %v1687 = vpop.f32.mrf.mxu0
    %v1688 = vadd.f32 %v1388, %v1687
    %v1689 = vpop.f32.mrf.mxu0
    %1690 = vmatprep.mubr.f32.mxu0 0.0
    %1691 = vmatmul.mubr.f32.gmra.mxu0 %v1475
    %v1692 = vpop.f32.mrf.mxu0
    %v1693 = vadd.f32 %v1388, %v1692
    %v1694 = vpop.f32.mrf.mxu0
    %1695 = vmatprep.mubr.f32.mxu0 0.0
    %1696 = vmatmul.mubr.f32.gmra.mxu0 %v1478
    %v1697 = vpop.f32.mrf.mxu0
    %v1698 = vadd.f32 %v1388, %v1697
    %v1699 = vpop.f32.mrf.mxu0
    %1700 = vmatprep.mubr.f32.mxu0 0.0
    %1701 = vmatmul.mubr.f32.gmra.mxu0 %v1481
    %v1702 = vpop.f32.mrf.mxu0
    %v1703 = vadd.f32 %v1388, %v1702
    %v1704 = vpop.f32.mrf.mxu0
    %1705 = vmatprep.mubr.f32.mxu0 0.0
    %1706 = vmatmul.mubr.f32.gmra.mxu0 %v1484
    %v1707 = vpop.f32.mrf.mxu0
    %v1708 = vadd.f32 %v1388, %v1707
    %v1709 = vpop.f32.mrf.mxu0
    %1710 = vdwg.mxu0
    %v1711 = vmax.f32 %v1553, 0.0
    %v1712 = vmax.f32 %v1558, 0.0
    %v1713 = vmax.f32 %v1563, 0.0
    %v1714 = vmax.f32 %v1568, 0.0
    %v1715 = vmax.f32 %v1573, 0.0
    %v1716 = vmax.f32 %v1578, 0.0
    %v1717 = vmax.f32 %v1583, 0.0
    %v1718 = vmax.f32 %v1588, 0.0
    %v1719 = vmax.f32 %v1593, 0.0
    %v1720 = vmax.f32 %v1598, 0.0
    %v1721 = vmax.f32 %v1603, 0.0
    %v1722 = vmax.f32 %v1608, 0.0
    %v1723 = vmax.f32 %v1613, 0.0
    %v1724 = vmax.f32 %v1618, 0.0
    %v1725 = vmax.f32 %v1623, 0.0
    %v1726 = vmax.f32 %v1628, 0.0
    %v1727 = vmax.f32 %v1633, 0.0
    %v1728 = vmax.f32 %v1638, 0.0
    %v1729 = vmax.f32 %v1643, 0.0
    %v1730 = vmax.f32 %v1648, 0.0
    %v1731 = vmax.f32 %v1653, 0.0
    %v1732 = vmax.f32 %v1658, 0.0
    %v1733 = vmax.f32 %v1663, 0.0
    %v1734 = vmax.f32 %v1668, 0.0
    %v1735 = vmax.f32 %v1673, 0.0
    %v1736 = vmax.f32 %v1678, 0.0
    %v1737 = vmax.f32 %v1683, 0.0
    %v1738 = vmax.f32 %v1688, 0.0
    %v1739 = vmax.f32 %v1693, 0.0
    %v1740 = vmax.f32 %v1698, 0.0
    %v1741 = vmax.f32 %v1703, 0.0
    %v1742 = vmax.f32 %v1708, 0.0
    %s1743 = scalar_lea.vmem %s2, 32
    %v1744 = vld [vmem:[%s1743] sm:$0xff]
    %v1745 = vld [vmem:[%s1743 + $0x8] sm:$0xff]
    %v1746 = vld [vmem:[%s1743 + $0x10] sm:$0xff]
    %v1747 = vld [vmem:[%s1743 + $0x18] sm:$0xff]
    %v1748 = vld [vmem:[%s3 + $0x1] sm:$0x1]
    %v1749 = vlaneseq
    %v1750 = vshrl.u32 %v1749, 7
    %v1751 = vsub.s32 0, %v1750
    %v1752 = vrot.slane %v1748, %v1751
    %v1754 = vsel %vm1389, %v1711, 0
    %v1757 = vsel %vm1389, %v1712, 0
    %v1760 = vsel %vm1389, %v1713, 0
    %v1763 = vsel %vm1389, %v1714, 0
    %v1766 = vsel %vm1389, %v1715, 0
    %v1769 = vsel %vm1389, %v1716, 0
    %v1772 = vsel %vm1389, %v1717, 0
    %v1775 = vsel %vm1389, %v1718, 0
    %v1778 = vsel %vm1389, %v1719, 0
    %v1781 = vsel %vm1389, %v1720, 0
    %v1784 = vsel %vm1389, %v1721, 0
    %v1787 = vsel %vm1389, %v1722, 0
    %v1790 = vsel %vm1389, %v1723, 0
    %v1793 = vsel %vm1389, %v1724, 0
    %v1796 = vsel %vm1389, %v1725, 0
    %v1799 = vsel %vm1389, %v1726, 0
    %v1802 = vsel %vm1389, %v1727, 0
    %v1805 = vsel %vm1389, %v1728, 0
    %v1808 = vsel %vm1389, %v1729, 0
    %v1811 = vsel %vm1389, %v1730, 0
    %v1814 = vsel %vm1389, %v1731, 0
    %v1817 = vsel %vm1389, %v1732, 0
    %v1820 = vsel %vm1389, %v1733, 0
    %v1823 = vsel %vm1389, %v1734, 0
    %v1826 = vsel %vm1389, %v1735, 0
    %v1829 = vsel %vm1389, %v1736, 0
    %v1832 = vsel %vm1389, %v1737, 0
    %v1835 = vsel %vm1389, %v1738, 0
    %v1838 = vsel %vm1389, %v1739, 0
    %v1841 = vsel %vm1389, %v1740, 0
    %v1844 = vsel %vm1389, %v1741, 0
    %v1847 = vsel %vm1389, %v1742, 0
    %1849 = vmatprep.subr.mxu0 0.0
    %1850 = vmatpush1.msra.mxu0 0.0
    %1851 = vmatprep.subr.mxu0 0.0
    %1852 = vmatpush1.msra.mxu0 0.0
    %1853 = vmatprep.subr.mxu0 0.0
    %1854 = vmatpush1.msra.mxu0 0.0
    %1855 = vmatprep.subr.mxu0 0.0
    %1856 = vmatpush1.msra.mxu0 0.0
    %1857 = vmatprep.subr.mxu0 0.0
    %1858 = vmatpush1.msra.mxu0 0.0
    %1859 = vmatprep.subr.mxu0 0.0
    %1860 = vmatpush1.msra.mxu0 0.0
    %1861 = vmatprep.subr.mxu0 0.0
    %1862 = vmatpush1.msra.mxu0 0.0
    %1863 = vmatprep.subr.mxu0 0.0
    %1864 = vmatpush1.msra.mxu0 0.0
    %1865 = vmatprep.subr.mxu0 0.0
    %1866 = vmatpush1.msra.mxu0 0.0
    %1867 = vmatprep.subr.mxu0 0.0
    %1868 = vmatpush1.msra.mxu0 0.0
    %1869 = vmatprep.subr.mxu0 0.0
    %1870 = vmatpush1.msra.mxu0 0.0
    %1871 = vmatprep.subr.mxu0 0.0
    %1872 = vmatpush1.msra.mxu0 0.0
    %1873 = vmatprep.subr.mxu0 0.0
    %1874 = vmatpush1.msra.mxu0 %v1747
    %1875 = vmatprep.subr.mxu0 0.0
    %1876 = vmatpush1.msra.mxu0 %v1746
    %1877 = vmatprep.subr.mxu0 0.0
    %1878 = vmatpush1.msra.mxu0 %v1745
    %1879 = vmatprep.subr.mxu0 0.0
    %1880 = vmatpush1.msra.mxu0 %v1744
    %1881 = vmatprep.subr.mxu0 0.0
    %1882 = vmatpush2.msra.mxu0 0.0
    %1883 = vmatprep.subr.mxu0 0.0
    %1884 = vmatpush2.msra.mxu0 0.0
    %1885 = vmatprep.subr.mxu0 0.0
    %1886 = vmatpush2.msra.mxu0 0.0
    %1887 = vmatprep.subr.mxu0 0.0
    %1888 = vmatpush2.msra.mxu0 0.0
    %1889 = vmatprep.subr.mxu0 0.0
    %1890 = vmatpush2.msra.mxu0 0.0
    %1891 = vmatprep.subr.mxu0 0.0
    %1892 = vmatpush2.msra.mxu0 0.0
    %1893 = vmatprep.subr.mxu0 0.0
    %1894 = vmatpush2.msra.mxu0 0.0
    %1895 = vmatprep.subr.mxu0 0.0
    %1896 = vmatpush2.msra.mxu0 0.0
    %1897 = vmatprep.subr.mxu0 0.0
    %1898 = vmatpush2.msra.mxu0 0.0
    %1899 = vmatprep.subr.mxu0 0.0
    %1900 = vmatpush2.msra.mxu0 0.0
    %1901 = vmatprep.subr.mxu0 0.0
    %1902 = vmatpush2.msra.mxu0 0.0
    %1903 = vmatprep.subr.mxu0 0.0
    %1904 = vmatpush2.msra.mxu0 0.0
    %1905 = vmatprep.subr.mxu0 0.0
    %1906 = vmatpush2.msra.mxu0 0.0
    %1907 = vmatprep.subr.mxu0 0.0
    %1908 = vmatpush2.msra.mxu0 0.0
    %1909 = vmatprep.subr.mxu0 0.0
    %1910 = vmatpush2.msra.mxu0 0.0
    %1911 = vmatprep.subr.mxu0 0.0
    %1912 = vmatpush2.msra.mxu0 0.0
    %1913 = vmatprep.mubr.f32.mxu0 0.0
    %1914 = vmatmul.mubr.f32.gmra.mxu0 %v1754
    %v1915 = vpop.f32.mrf.mxu0
    %v1916 = vadd.f32 %v1752, %v1915
    %v1917 = vpop.f32.mrf.mxu0
    %1918 = vmatprep.mubr.f32.mxu0 0.0
    %1919 = vmatmul.mubr.f32.gmra.mxu0 %v1757
    %v1920 = vpop.f32.mrf.mxu0
    %v1921 = vadd.f32 %v1752, %v1920
    %v1922 = vpop.f32.mrf.mxu0
    %1923 = vmatprep.mubr.f32.mxu0 0.0
    %1924 = vmatmul.mubr.f32.gmra.mxu0 %v1760
    %v1925 = vpop.f32.mrf.mxu0
    %v1926 = vadd.f32 %v1752, %v1925
    %v1927 = vpop.f32.mrf.mxu0
    %1928 = vmatprep.mubr.f32.mxu0 0.0
    %1929 = vmatmul.mubr.f32.gmra.mxu0 %v1763
    %v1930 = vpop.f32.mrf.mxu0
    %v1931 = vadd.f32 %v1752, %v1930
    %v1932 = vpop.f32.mrf.mxu0
    %1933 = vmatprep.mubr.f32.mxu0 0.0
    %1934 = vmatmul.mubr.f32.gmra.mxu0 %v1766
    %v1935 = vpop.f32.mrf.mxu0
    %v1936 = vadd.f32 %v1752, %v1935
    %v1937 = vpop.f32.mrf.mxu0
    %1938 = vmatprep.mubr.f32.mxu0 0.0
    %1939 = vmatmul.mubr.f32.gmra.mxu0 %v1769
    %v1940 = vpop.f32.mrf.mxu0
    %v1941 = vadd.f32 %v1752, %v1940
    %v1942 = vpop.f32.mrf.mxu0
    %1943 = vmatprep.mubr.f32.mxu0 0.0
    %1944 = vmatmul.mubr.f32.gmra.mxu0 %v1772
    %v1945 = vpop.f32.mrf.mxu0
    %v1946 = vadd.f32 %v1752, %v1945
    %v1947 = vpop.f32.mrf.mxu0
    %1948 = vmatprep.mubr.f32.mxu0 0.0
    %1949 = vmatmul.mubr.f32.gmra.mxu0 %v1775
    %v1950 = vpop.f32.mrf.mxu0
    %v1951 = vadd.f32 %v1752, %v1950
    %v1952 = vpop.f32.mrf.mxu0
    %1953 = vmatprep.mubr.f32.mxu0 0.0
    %1954 = vmatmul.mubr.f32.gmra.mxu0 %v1778
    %v1955 = vpop.f32.mrf.mxu0
    %v1956 = vadd.f32 %v1752, %v1955
    %v1957 = vpop.f32.mrf.mxu0
    %1958 = vmatprep.mubr.f32.mxu0 0.0
    %1959 = vmatmul.mubr.f32.gmra.mxu0 %v1781
    %v1960 = vpop.f32.mrf.mxu0
    %v1961 = vadd.f32 %v1752, %v1960
    %v1962 = vpop.f32.mrf.mxu0
    %1963 = vmatprep.mubr.f32.mxu0 0.0
    %1964 = vmatmul.mubr.f32.gmra.mxu0 %v1784
    %v1965 = vpop.f32.mrf.mxu0
    %v1966 = vadd.f32 %v1752, %v1965
    %v1967 = vpop.f32.mrf.mxu0
    %1968 = vmatprep.mubr.f32.mxu0 0.0
    %1969 = vmatmul.mubr.f32.gmra.mxu0 %v1787
    %v1970 = vpop.f32.mrf.mxu0
    %v1971 = vadd.f32 %v1752, %v1970
    %v1972 = vpop.f32.mrf.mxu0
    %1973 = vmatprep.mubr.f32.mxu0 0.0
    %1974 = vmatmul.mubr.f32.gmra.mxu0 %v1790
    %v1975 = vpop.f32.mrf.mxu0
    %v1976 = vadd.f32 %v1752, %v1975
    %v1977 = vpop.f32.mrf.mxu0
    %1978 = vmatprep.mubr.f32.mxu0 0.0
    %1979 = vmatmul.mubr.f32.gmra.mxu0 %v1793
    %v1980 = vpop.f32.mrf.mxu0
    %v1981 = vadd.f32 %v1752, %v1980
    %v1982 = vpop.f32.mrf.mxu0
    %1983 = vmatprep.mubr.f32.mxu0 0.0
    %1984 = vmatmul.mubr.f32.gmra.mxu0 %v1796
    %v1985 = vpop.f32.mrf.mxu0
    %v1986 = vadd.f32 %v1752, %v1985
    %v1987 = vpop.f32.mrf.mxu0
    %1988 = vmatprep.mubr.f32.mxu0 0.0
    %1989 = vmatmul.mubr.f32.gmra.mxu0 %v1799
    %v1990 = vpop.f32.mrf.mxu0
    %v1991 = vadd.f32 %v1752, %v1990
    %v1992 = vpop.f32.mrf.mxu0
    %1993 = vmatprep.mubr.f32.mxu0 0.0
    %1994 = vmatmul.mubr.f32.gmra.mxu0 %v1802
    %v1995 = vpop.f32.mrf.mxu0
    %v1996 = vadd.f32 %v1752, %v1995
    %v1997 = vpop.f32.mrf.mxu0
    %1998 = vmatprep.mubr.f32.mxu0 0.0
    %1999 = vmatmul.mubr.f32.gmra.mxu0 %v1805
    %v2000 = vpop.f32.mrf.mxu0
    %v2001 = vadd.f32 %v1752, %v2000
    %v2002 = vpop.f32.mrf.mxu0
    %2003 = vmatprep.mubr.f32.mxu0 0.0
    %2004 = vmatmul.mubr.f32.gmra.mxu0 %v1808
    %v2005 = vpop.f32.mrf.mxu0
    %v2006 = vadd.f32 %v1752, %v2005
    %v2007 = vpop.f32.mrf.mxu0
    %2008 = vmatprep.mubr.f32.mxu0 0.0
    %2009 = vmatmul.mubr.f32.gmra.mxu0 %v1811
    %v2010 = vpop.f32.mrf.mxu0
    %v2011 = vadd.f32 %v1752, %v2010
    %v2012 = vpop.f32.mrf.mxu0
    %2013 = vmatprep.mubr.f32.mxu0 0.0
    %2014 = vmatmul.mubr.f32.gmra.mxu0 %v1814
    %v2015 = vpop.f32.mrf.mxu0
    %v2016 = vadd.f32 %v1752, %v2015
    %v2017 = vpop.f32.mrf.mxu0
    %2018 = vmatprep.mubr.f32.mxu0 0.0
    %2019 = vmatmul.mubr.f32.gmra.mxu0 %v1817
    %v2020 = vpop.f32.mrf.mxu0
    %v2021 = vadd.f32 %v1752, %v2020
    %v2022 = vpop.f32.mrf.mxu0
    %2023 = vmatprep.mubr.f32.mxu0 0.0
    %2024 = vmatmul.mubr.f32.gmra.mxu0 %v1820
    %v2025 = vpop.f32.mrf.mxu0
    %v2026 = vadd.f32 %v1752, %v2025
    %v2027 = vpop.f32.mrf.mxu0
    %2028 = vmatprep.mubr.f32.mxu0 0.0
    %2029 = vmatmul.mubr.f32.gmra.mxu0 %v1823
    %v2030 = vpop.f32.mrf.mxu0
    %v2031 = vadd.f32 %v1752, %v2030
    %v2032 = vpop.f32.mrf.mxu0
    %2033 = vmatprep.mubr.f32.mxu0 0.0
    %2034 = vmatmul.mubr.f32.gmra.mxu0 %v1826
    %v2035 = vpop.f32.mrf.mxu0
    %v2036 = vadd.f32 %v1752, %v2035
    %v2037 = vpop.f32.mrf.mxu0
    %2038 = vmatprep.mubr.f32.mxu0 0.0
    %2039 = vmatmul.mubr.f32.gmra.mxu0 %v1829
    %v2040 = vpop.f32.mrf.mxu0
    %v2041 = vadd.f32 %v1752, %v2040
    %v2042 = vpop.f32.mrf.mxu0
    %2043 = vmatprep.mubr.f32.mxu0 0.0
    %2044 = vmatmul.mubr.f32.gmra.mxu0 %v1832
    %v2045 = vpop.f32.mrf.mxu0
    %v2046 = vadd.f32 %v1752, %v2045
    %v2047 = vpop.f32.mrf.mxu0
    %2048 = vmatprep.mubr.f32.mxu0 0.0
    %2049 = vmatmul.mubr.f32.gmra.mxu0 %v1835
    %v2050 = vpop.f32.mrf.mxu0
    %v2051 = vadd.f32 %v1752, %v2050
    %v2052 = vpop.f32.mrf.mxu0
    %2053 = vmatprep.mubr.f32.mxu0 0.0
    %2054 = vmatmul.mubr.f32.gmra.mxu0 %v1838
    %v2055 = vpop.f32.mrf.mxu0
    %v2056 = vadd.f32 %v1752, %v2055
    %v2057 = vpop.f32.mrf.mxu0
    %2058 = vmatprep.mubr.f32.mxu0 0.0
    %2059 = vmatmul.mubr.f32.gmra.mxu0 %v1841
    %v2060 = vpop.f32.mrf.mxu0
    %v2061 = vadd.f32 %v1752, %v2060
    %v2062 = vpop.f32.mrf.mxu0
    %2063 = vmatprep.mubr.f32.mxu0 0.0
    %2064 = vmatmul.mubr.f32.gmra.mxu0 %v1844
    %v2065 = vpop.f32.mrf.mxu0
    %v2066 = vadd.f32 %v1752, %v2065
    %v2067 = vpop.f32.mrf.mxu0
    %2068 = vmatprep.mubr.f32.mxu0 0.0
    %2069 = vmatmul.mubr.f32.gmra.mxu0 %v1847
    %v2070 = vpop.f32.mrf.mxu0
    %v2071 = vadd.f32 %v1752, %v2070
    %v2072 = vpop.f32.mrf.mxu0
    %2073 = vdwg.mxu0
    %v2074 = vmax.f32 %v1916, 0.0
    %v2075 = vmax.f32 %v1921, 0.0
    %v2076 = vmax.f32 %v1926, 0.0
    %v2077 = vmax.f32 %v1931, 0.0
    %v2078 = vmax.f32 %v1936, 0.0
    %v2079 = vmax.f32 %v1941, 0.0
    %v2080 = vmax.f32 %v1946, 0.0
    %v2081 = vmax.f32 %v1951, 0.0
    %v2082 = vmax.f32 %v1956, 0.0
    %v2083 = vmax.f32 %v1961, 0.0
    %v2084 = vmax.f32 %v1966, 0.0
    %v2085 = vmax.f32 %v1971, 0.0
    %v2086 = vmax.f32 %v1976, 0.0
    %v2087 = vmax.f32 %v1981, 0.0
    %v2088 = vmax.f32 %v1986, 0.0
    %v2089 = vmax.f32 %v1991, 0.0
    %v2090 = vmax.f32 %v1996, 0.0
    %v2091 = vmax.f32 %v2001, 0.0
    %v2092 = vmax.f32 %v2006, 0.0
    %v2093 = vmax.f32 %v2011, 0.0
    %v2094 = vmax.f32 %v2016, 0.0
    %v2095 = vmax.f32 %v2021, 0.0
    %v2096 = vmax.f32 %v2026, 0.0
    %v2097 = vmax.f32 %v2031, 0.0
    %v2098 = vmax.f32 %v2036, 0.0
    %v2099 = vmax.f32 %v2041, 0.0
    %v2100 = vmax.f32 %v2046, 0.0
    %v2101 = vmax.f32 %v2051, 0.0
    %v2102 = vmax.f32 %v2056, 0.0
    %v2103 = vmax.f32 %v2061, 0.0
    %v2104 = vmax.f32 %v2066, 0.0
    %v2105 = vmax.f32 %v2071, 0.0
    %v2106 = vld [vmem:[%s4] sm:$0xff]
    %v2107 = vld [vmem:[%s4 + $0x8] sm:$0xff]
    %v2108 = vld [vmem:[%s4 + $0x10] sm:$0xff]
    %v2109 = vld [vmem:[%s4 + $0x18] sm:$0xff]
    %v2110 = vld [vmem:[%s5] sm:$0x1]
    %v2112 = vlaneseq
    %v2113 = vshrl.u32 %v2112, 7
    %v2114 = vsub.s32 0, %v2113
    %v2115 = vrot.slane %v2110, %v2114
    %v2118 = vsel %vm1389, %v2074, 0
    %v2121 = vsel %vm1389, %v2075, 0
    %v2124 = vsel %vm1389, %v2076, 0
    %v2127 = vsel %vm1389, %v2077, 0
    %v2130 = vsel %vm1389, %v2078, 0
    %v2133 = vsel %vm1389, %v2079, 0
    %v2136 = vsel %vm1389, %v2080, 0
    %v2139 = vsel %vm1389, %v2081, 0
    %v2142 = vsel %vm1389, %v2082, 0
    %v2145 = vsel %vm1389, %v2083, 0
    %v2148 = vsel %vm1389, %v2084, 0
    %v2151 = vsel %vm1389, %v2085, 0
    %v2154 = vsel %vm1389, %v2086, 0
    %v2157 = vsel %vm1389, %v2087, 0
    %v2160 = vsel %vm1389, %v2088, 0
    %v2163 = vsel %vm1389, %v2089, 0
    %v2166 = vsel %vm1389, %v2090, 0
    %v2169 = vsel %vm1389, %v2091, 0
    %v2172 = vsel %vm1389, %v2092, 0
    %v2175 = vsel %vm1389, %v2093, 0
    %v2178 = vsel %vm1389, %v2094, 0
    %v2181 = vsel %vm1389, %v2095, 0
    %v2184 = vsel %vm1389, %v2096, 0
    %v2187 = vsel %vm1389, %v2097, 0
    %v2190 = vsel %vm1389, %v2098, 0
    %v2193 = vsel %vm1389, %v2099, 0
    %v2196 = vsel %vm1389, %v2100, 0
    %v2199 = vsel %vm1389, %v2101, 0
    %v2202 = vsel %vm1389, %v2102, 0
    %v2205 = vsel %vm1389, %v2103, 0
    %v2208 = vsel %vm1389, %v2104, 0
    %v2211 = vsel %vm1389, %v2105, 0
    %2213 = vmatprep.subr.mxu0 0.0
    %2214 = vmatpush1.msra.mxu0 0.0
    %2215 = vmatprep.subr.mxu0 0.0
    %2216 = vmatpush1.msra.mxu0 0.0
    %2217 = vmatprep.subr.mxu0 0.0
    %2218 = vmatpush1.msra.mxu0 0.0
    %2219 = vmatprep.subr.mxu0 0.0
    %2220 = vmatpush1.msra.mxu0 0.0
    %2221 = vmatprep.subr.mxu0 0.0
    %2222 = vmatpush1.msra.mxu0 0.0
    %2223 = vmatprep.subr.mxu0 0.0
    %2224 = vmatpush1.msra.mxu0 0.0
    %2225 = vmatprep.subr.mxu0 0.0
    %2226 = vmatpush1.msra.mxu0 0.0
    %2227 = vmatprep.subr.mxu0 0.0
    %2228 = vmatpush1.msra.mxu0 0.0
    %2229 = vmatprep.subr.mxu0 0.0
    %2230 = vmatpush1.msra.mxu0 0.0
    %2231 = vmatprep.subr.mxu0 0.0
    %2232 = vmatpush1.msra.mxu0 0.0
    %2233 = vmatprep.subr.mxu0 0.0
    %2234 = vmatpush1.msra.mxu0 0.0
    %2235 = vmatprep.subr.mxu0 0.0
    %2236 = vmatpush1.msra.mxu0 0.0
    %2237 = vmatprep.subr.mxu0 0.0
    %2238 = vmatpush1.msra.mxu0 %v2109
    %2239 = vmatprep.subr.mxu0 0.0
    %2240 = vmatpush1.msra.mxu0 %v2108
    %2241 = vmatprep.subr.mxu0 0.0
    %2242 = vmatpush1.msra.mxu0 %v2107
    %2243 = vmatprep.subr.mxu0 0.0
    %2244 = vmatpush1.msra.mxu0 %v2106
    %2245 = vmatprep.subr.mxu0 0.0
    %2246 = vmatpush2.msra.mxu0 0.0
    %2247 = vmatprep.subr.mxu0 0.0
    %2248 = vmatpush2.msra.mxu0 0.0
    %2249 = vmatprep.subr.mxu0 0.0
    %2250 = vmatpush2.msra.mxu0 0.0
    %2251 = vmatprep.subr.mxu0 0.0
    %2252 = vmatpush2.msra.mxu0 0.0
    %2253 = vmatprep.subr.mxu0 0.0
    %2254 = vmatpush2.msra.mxu0 0.0
    %2255 = vmatprep.subr.mxu0 0.0
    %2256 = vmatpush2.msra.mxu0 0.0
    %2257 = vmatprep.subr.mxu0 0.0
    %2258 = vmatpush2.msra.mxu0 0.0
    %2259 = vmatprep.subr.mxu0 0.0
    %2260 = vmatpush2.msra.mxu0 0.0
    %2261 = vmatprep.subr.mxu0 0.0
    %2262 = vmatpush2.msra.mxu0 0.0
    %2263 = vmatprep.subr.mxu0 0.0
    %2264 = vmatpush2.msra.mxu0 0.0
    %2265 = vmatprep.subr.mxu0 0.0
    %2266 = vmatpush2.msra.mxu0 0.0
    %2267 = vmatprep.subr.mxu0 0.0
    %2268 = vmatpush2.msra.mxu0 0.0
    %2269 = vmatprep.subr.mxu0 0.0
    %2270 = vmatpush2.msra.mxu0 0.0
    %2271 = vmatprep.subr.mxu0 0.0
    %2272 = vmatpush2.msra.mxu0 0.0
    %2273 = vmatprep.subr.mxu0 0.0
    %2274 = vmatpush2.msra.mxu0 0.0
    %2275 = vmatprep.subr.mxu0 0.0
    %2276 = vmatpush2.msra.mxu0 0.0
    %2277 = vmatprep.mubr.f32.mxu0 0.0
    %2278 = vmatmul.mubr.f32.gmra.mxu0 %v2118
    %v2279 = vpop.f32.mrf.mxu0
    %v2280 = vadd.f32 %v2115, %v2279
    %v2281 = vpop.f32.mrf.mxu0
    %2282 = vmatprep.mubr.f32.mxu0 0.0
    %2283 = vmatmul.mubr.f32.gmra.mxu0 %v2121
    %v2284 = vpop.f32.mrf.mxu0
    %v2285 = vadd.f32 %v2115, %v2284
    %v2286 = vpop.f32.mrf.mxu0
    %2287 = vmatprep.mubr.f32.mxu0 0.0
    %2288 = vmatmul.mubr.f32.gmra.mxu0 %v2124
    %v2289 = vpop.f32.mrf.mxu0
    %v2290 = vadd.f32 %v2115, %v2289
    %v2291 = vpop.f32.mrf.mxu0
    %2292 = vmatprep.mubr.f32.mxu0 0.0
    %2293 = vmatmul.mubr.f32.gmra.mxu0 %v2127
    %v2294 = vpop.f32.mrf.mxu0
    %v2295 = vadd.f32 %v2115, %v2294
    %v2296 = vpop.f32.mrf.mxu0
    %2297 = vmatprep.mubr.f32.mxu0 0.0
    %2298 = vmatmul.mubr.f32.gmra.mxu0 %v2130
    %v2299 = vpop.f32.mrf.mxu0
    %v2300 = vadd.f32 %v2115, %v2299
    %v2301 = vpop.f32.mrf.mxu0
    %2302 = vmatprep.mubr.f32.mxu0 0.0
    %2303 = vmatmul.mubr.f32.gmra.mxu0 %v2133
    %v2304 = vpop.f32.mrf.mxu0
    %v2305 = vadd.f32 %v2115, %v2304
    %v2306 = vpop.f32.mrf.mxu0
    %2307 = vmatprep.mubr.f32.mxu0 0.0
    %2308 = vmatmul.mubr.f32.gmra.mxu0 %v2136
    %v2309 = vpop.f32.mrf.mxu0
    %v2310 = vadd.f32 %v2115, %v2309
    %v2311 = vpop.f32.mrf.mxu0
    %2312 = vmatprep.mubr.f32.mxu0 0.0
    %2313 = vmatmul.mubr.f32.gmra.mxu0 %v2139
    %v2314 = vpop.f32.mrf.mxu0
    %v2315 = vadd.f32 %v2115, %v2314
    %v2316 = vpop.f32.mrf.mxu0
    %2317 = vmatprep.mubr.f32.mxu0 0.0
    %2318 = vmatmul.mubr.f32.gmra.mxu0 %v2142
    %v2319 = vpop.f32.mrf.mxu0
    %v2320 = vadd.f32 %v2115, %v2319
    %v2321 = vpop.f32.mrf.mxu0
    %2322 = vmatprep.mubr.f32.mxu0 0.0
    %2323 = vmatmul.mubr.f32.gmra.mxu0 %v2145
    %v2324 = vpop.f32.mrf.mxu0
    %v2325 = vadd.f32 %v2115, %v2324
    %v2326 = vpop.f32.mrf.mxu0
    %2327 = vmatprep.mubr.f32.mxu0 0.0
    %2328 = vmatmul.mubr.f32.gmra.mxu0 %v2148
    %v2329 = vpop.f32.mrf.mxu0
    %v2330 = vadd.f32 %v2115, %v2329
    %v2331 = vpop.f32.mrf.mxu0
    %2332 = vmatprep.mubr.f32.mxu0 0.0
    %2333 = vmatmul.mubr.f32.gmra.mxu0 %v2151
    %v2334 = vpop.f32.mrf.mxu0
    %v2335 = vadd.f32 %v2115, %v2334
    %v2336 = vpop.f32.mrf.mxu0
    %2337 = vmatprep.mubr.f32.mxu0 0.0
    %2338 = vmatmul.mubr.f32.gmra.mxu0 %v2154
    %v2339 = vpop.f32.mrf.mxu0
    %v2340 = vadd.f32 %v2115, %v2339
    %v2341 = vpop.f32.mrf.mxu0
    %2342 = vmatprep.mubr.f32.mxu0 0.0
    %2343 = vmatmul.mubr.f32.gmra.mxu0 %v2157
    %v2344 = vpop.f32.mrf.mxu0
    %v2345 = vadd.f32 %v2115, %v2344
    %v2346 = vpop.f32.mrf.mxu0
    %2347 = vmatprep.mubr.f32.mxu0 0.0
    %2348 = vmatmul.mubr.f32.gmra.mxu0 %v2160
    %v2349 = vpop.f32.mrf.mxu0
    %v2350 = vadd.f32 %v2115, %v2349
    %v2351 = vpop.f32.mrf.mxu0
    %2352 = vmatprep.mubr.f32.mxu0 0.0
    %2353 = vmatmul.mubr.f32.gmra.mxu0 %v2163
    %v2354 = vpop.f32.mrf.mxu0
    %v2355 = vadd.f32 %v2115, %v2354
    %v2356 = vpop.f32.mrf.mxu0
    %2357 = vmatprep.mubr.f32.mxu0 0.0
    %2358 = vmatmul.mubr.f32.gmra.mxu0 %v2166
    %v2359 = vpop.f32.mrf.mxu0
    %v2360 = vadd.f32 %v2115, %v2359
    %v2361 = vpop.f32.mrf.mxu0
    %2362 = vmatprep.mubr.f32.mxu0 0.0
    %2363 = vmatmul.mubr.f32.gmra.mxu0 %v2169
    %v2364 = vpop.f32.mrf.mxu0
    %v2365 = vadd.f32 %v2115, %v2364
    %v2366 = vpop.f32.mrf.mxu0
    %2367 = vmatprep.mubr.f32.mxu0 0.0
    %2368 = vmatmul.mubr.f32.gmra.mxu0 %v2172
    %v2369 = vpop.f32.mrf.mxu0
    %v2370 = vadd.f32 %v2115, %v2369
    %v2371 = vpop.f32.mrf.mxu0
    %2372 = vmatprep.mubr.f32.mxu0 0.0
    %2373 = vmatmul.mubr.f32.gmra.mxu0 %v2175
    %v2374 = vpop.f32.mrf.mxu0
    %v2375 = vadd.f32 %v2115, %v2374
    %v2376 = vpop.f32.mrf.mxu0
    %2377 = vmatprep.mubr.f32.mxu0 0.0
    %2378 = vmatmul.mubr.f32.gmra.mxu0 %v2178
    %v2379 = vpop.f32.mrf.mxu0
    %v2380 = vadd.f32 %v2115, %v2379
    %v2381 = vpop.f32.mrf.mxu0
    %2382 = vmatprep.mubr.f32.mxu0 0.0
    %2383 = vmatmul.mubr.f32.gmra.mxu0 %v2181
    %v2384 = vpop.f32.mrf.mxu0
    %v2385 = vadd.f32 %v2115, %v2384
    %v2386 = vpop.f32.mrf.mxu0
    %2387 = vmatprep.mubr.f32.mxu0 0.0
    %2388 = vmatmul.mubr.f32.gmra.mxu0 %v2184
    %v2389 = vpop.f32.mrf.mxu0
    %v2390 = vadd.f32 %v2115, %v2389
    %v2391 = vpop.f32.mrf.mxu0
    %2392 = vmatprep.mubr.f32.mxu0 0.0
    %2393 = vmatmul.mubr.f32.gmra.mxu0 %v2187
    %v2394 = vpop.f32.mrf.mxu0
    %v2395 = vadd.f32 %v2115, %v2394
    %v2396 = vpop.f32.mrf.mxu0
    %2397 = vmatprep.mubr.f32.mxu0 0.0
    %2398 = vmatmul.mubr.f32.gmra.mxu0 %v2190
    %v2399 = vpop.f32.mrf.mxu0
    %v2400 = vadd.f32 %v2115, %v2399
    %v2401 = vpop.f32.mrf.mxu0
    %2402 = vmatprep.mubr.f32.mxu0 0.0
    %2403 = vmatmul.mubr.f32.gmra.mxu0 %v2193
    %v2404 = vpop.f32.mrf.mxu0
    %v2405 = vadd.f32 %v2115, %v2404
    %v2406 = vpop.f32.mrf.mxu0
    %2407 = vmatprep.mubr.f32.mxu0 0.0
    %2408 = vmatmul.mubr.f32.gmra.mxu0 %v2196
    %v2409 = vpop.f32.mrf.mxu0
    %v2410 = vadd.f32 %v2115, %v2409
    %v2411 = vpop.f32.mrf.mxu0
    %2412 = vmatprep.mubr.f32.mxu0 0.0
    %2413 = vmatmul.mubr.f32.gmra.mxu0 %v2199
    %v2414 = vpop.f32.mrf.mxu0
    %v2415 = vadd.f32 %v2115, %v2414
    %v2416 = vpop.f32.mrf.mxu0
    %2417 = vmatprep.mubr.f32.mxu0 0.0
    %2418 = vmatmul.mubr.f32.gmra.mxu0 %v2202
    %v2419 = vpop.f32.mrf.mxu0
    %v2420 = vadd.f32 %v2115, %v2419
    %v2421 = vpop.f32.mrf.mxu0
    %2422 = vmatprep.mubr.f32.mxu0 0.0
    %2423 = vmatmul.mubr.f32.gmra.mxu0 %v2205
    %v2424 = vpop.f32.mrf.mxu0
    %v2425 = vadd.f32 %v2115, %v2424
    %v2426 = vpop.f32.mrf.mxu0
    %2427 = vmatprep.mubr.f32.mxu0 0.0
    %2428 = vmatmul.mubr.f32.gmra.mxu0 %v2208
    %v2429 = vpop.f32.mrf.mxu0
    %v2430 = vadd.f32 %v2115, %v2429
    %v2431 = vpop.f32.mrf.mxu0
    %2432 = vmatprep.mubr.f32.mxu0 0.0
    %2433 = vmatmul.mubr.f32.gmra.mxu0 %v2211
    %v2434 = vpop.f32.mrf.mxu0
    %v2435 = vadd.f32 %v2115, %v2434
    %v2436 = vpop.f32.mrf.mxu0
    %2437 = vdwg.mxu0
    %2438 = vst [vmem:[#allocation2] sm:$0xff] %v2280
    %2439 = vst [vmem:[#allocation2 + $0x8] sm:$0xff] %v2285
    %2440 = vst [vmem:[#allocation2 + $0x10] sm:$0xff] %v2290
    %2441 = vst [vmem:[#allocation2 + $0x18] sm:$0xff] %v2295
    %2442 = vst [vmem:[#allocation2 + $0x20] sm:$0xff] %v2300
    %2443 = vst [vmem:[#allocation2 + $0x28] sm:$0xff] %v2305
    %2444 = vst [vmem:[#allocation2 + $0x30] sm:$0xff] %v2310
    %2445 = vst [vmem:[#allocation2 + $0x38] sm:$0xff] %v2315
    %2446 = vst [vmem:[#allocation2 + $0x40] sm:$0xff] %v2320
    %2447 = vst [vmem:[#allocation2 + $0x48] sm:$0xff] %v2325
    %2448 = vst [vmem:[#allocation2 + $0x50] sm:$0xff] %v2330
    %2449 = vst [vmem:[#allocation2 + $0x58] sm:$0xff] %v2335
    %2450 = vst [vmem:[#allocation2 + $0x60] sm:$0xff] %v2340
    %2451 = vst [vmem:[#allocation2 + $0x68] sm:$0xff] %v2345
    %2452 = vst [vmem:[#allocation2 + $0x70] sm:$0xff] %v2350
    %2453 = vst [vmem:[#allocation2 + $0x78] sm:$0xff] %v2355
    %2454 = vst [vmem:[#allocation2 + $0x80] sm:$0xff] %v2360
    %2455 = vst [vmem:[#allocation2 + $0x88] sm:$0xff] %v2365
    %2456 = vst [vmem:[#allocation2 + $0x90] sm:$0xff] %v2370
    %2457 = vst [vmem:[#allocation2 + $0x98] sm:$0xff] %v2375
    %2458 = vst [vmem:[#allocation2 + $0xa0] sm:$0xff] %v2380
    %2459 = vst [vmem:[#allocation2 + $0xa8] sm:$0xff] %v2385
    %2460 = vst [vmem:[#allocation2 + $0xb0] sm:$0xff] %v2390
    %2461 = vst [vmem:[#allocation2 + $0xb8] sm:$0xff] %v2395
    %2462 = vst [vmem:[#allocation2 + $0xc0] sm:$0xff] %v2400
    %2463 = vst [vmem:[#allocation2 + $0xc8] sm:$0xff] %v2405
    %2464 = vst [vmem:[#allocation2 + $0xd0] sm:$0xff] %v2410
    %2465 = vst [vmem:[#allocation2 + $0xd8] sm:$0xff] %v2415
    %2466 = vst [vmem:[#allocation2 + $0xe0] sm:$0xff] %v2420
    %2467 = vst [vmem:[#allocation2 + $0xe8] sm:$0xff] %v2425
    %2468 = vst [vmem:[#allocation2 + $0xf0] sm:$0xff] %v2430
    %2469 = vst [vmem:[#allocation2 + $0xf8] sm:$0xff] %v2435
    // Predicated region
    $region26: #{tpu_custom_call.1} parent=1 // pred_check
      _
    $region27: #{tpu_custom_call.1} parent=1 // pred_check_branch
      %2471 = sbr.rel (0) target = $region29
    $region28: #{tpu_custom_call.1} parent=1 // pred_region
      %s2473 = ssub.s32 4096, 4096
      %2474 = vsyncadd [#allocation3], %s2473
      %s2475 = sshll.u32 [#allocation2], 4
      %s2476 = int_to_ptr.vmem [resolvable:$true] %s2475
      %2481 = dma.vmem_to_hbm [thread:$0]  %s2476, 4096, %s6, [#allocation3], 128, 128, 8
    $region29: #{tpu_custom_call.1} parent=1 // pred_fallthru
      _
    // Predicated region
    $region30: #{tpu_custom_call.1} parent=1 // pred_check
      _
    $region31: #{tpu_custom_call.1} parent=1 // pred_check_branch
      %2483 = sbr.rel (0) target = $region33
    $region32: #{tpu_custom_call.1} parent=1 // pred_region
      %2484 = dma.done [#allocation3], 4096
    $region33: #{tpu_custom_call.1} parent=1 // pred_fallthru
      _
    %2485 = vsyncpa [#allocation3], 1

</llo_original>
